<compile_context>
chip_gen: v7x
topology: tpu7x:2x2x1
jax: 0.10.0
libtpu: 0.0.40
codegen_flags: <defaults>
</compile_context>

<pallas_src>
import functools

import jax
import jax.numpy as jnp
import numpy as np
from jax import lax
from jax.experimental import pallas as pl
from jax.experimental.pallas import tpu as pltpu

EPS = 1e-5   # nn.InstanceNorm2d default eps
DP = 8       # d-channel maps padded to one 8-row sublane tile


# --------------------------------------------------------------------------
# Fused Pallas kernel: one batch element per grid step, everything in VMEM
# --------------------------------------------------------------------------
def _mixffm_fused_kernel(xg_ref, mask_ref, w1_ref, w2_ref, w3_ref, w4_ref,
                         o_ref, *, hm, wm, c):
    npos = hm * wm
    # per-shift validity masks (precomputed host-side); mk[(di+1)*3 + (dj+1)]
    mk = [mask_ref[t] for t in range(9)]                        # each (1, npos)

    def tap(x, di, dj):
        # out[:, p] = x[:, p + di*wm + dj], zeroed where (row+di, col+dj)
        # leaves the (hm, wm) map -- lane rotate (XLU) + mask (VPU), no copies.
        s = (-(di * wm + dj)) % npos
        t = pltpu.roll(x, s, 1) if s else x
        if di == 0 and dj == 0:
            return t
        return t * mk[(di + 1) * 3 + (dj + 1)]

    def in_relu(x, count):
        # InstanceNorm2d(affine=False) + ReLU, centered two-pass lane reduction
        inv = 1.0 / count
        mean = jnp.sum(x, axis=-1, keepdims=True) * inv
        xc = x - mean
        var = jnp.sum(xc * xc, axis=-1, keepdims=True) * inv
        return jnp.maximum(xc * lax.rsqrt(var + EPS), 0.0)

    # ---- stage 1: Conv2d(C->d, 4x4, s2, p1) + IN + ReLU ----------------------
    # Space-to-depth groups (host prep): the strided 4x4 conv becomes a 3x3-
    # neighbourhood conv on the 4 parity groups; 16 taps -> ONE K=16*C matmul.
    groups = [xg_ref[0, g] for g in range(4)]                   # each (C, npos)
    kmap = {0: (1, -1), 1: (0, 0), 2: (1, 0), 3: (0, 1)}        # k -> (parity, shift)
    taps1 = []
    for kh in range(4):
        ph, di = kmap[kh]
        for kw in range(4):
            pw, dj = kmap[kw]
            taps1.append(tap(groups[ph * 2 + pw], di, dj))
    patch1 = jnp.concatenate(taps1, axis=0)                     # (16*C, npos)
    y1 = jnp.dot(w1_ref[...], patch1, preferred_element_type=jnp.float32)
    y1 = in_relu(y1, npos)                                      # (DP, npos), rows >= d are 0

    # ---- stage 2: Conv2d(d->d, 3x3, s1, p1) + IN + ReLU ----------------------
    patch2 = jnp.concatenate(
        [tap(y1, di, dj) for di in (-1, 0, 1) for dj in (-1, 0, 1)], axis=0)
    y2 = jnp.dot(w2_ref[...], patch2, preferred_element_type=jnp.float32)
    y2 = in_relu(y2, npos)                                      # (DP, npos)

    # ---- stage 3: ConvTranspose2d(d->C, 4x4, s2, p1) + IN + ReLU -------------
    # Sub-pixel decomposition, all 4 phases fused into ONE matmul via the
    # combined (4*C, 9*DP) weight.  Output stays phase-major (4, C, npos); the
    # InstanceNorm statistics over the full-res map are the joint statistics
    # over the 4 phase maps, so no interleave is needed.
    patch3 = jnp.concatenate(
        [tap(y2, a, b) for a in (-1, 0, 1) for b in (-1, 0, 1)], axis=0)
    z = jnp.dot(w3_ref[...], patch3, preferred_element_type=jnp.float32)
    z = z.reshape(4, c, npos)
    cnt = 4.0 * npos
    mean3 = jnp.sum(jnp.sum(z, axis=2, keepdims=True), axis=0, keepdims=True) / cnt
    zc = z - mean3
    var3 = jnp.sum(jnp.sum(zc * zc, axis=2, keepdims=True), axis=0, keepdims=True) / cnt
    zn = jnp.maximum(zc * lax.rsqrt(var3 + EPS), 0.0)           # (4, C, npos)

    # ---- stage 4: conv_squeeze_0 = Conv2d(C->C, 3x3, s1, p1) + IN + ReLU -----
    # Evaluated per sub-pixel output phase directly on the phase maps of zn:
    # each tap picks the right source phase + half-res shift, so the full-res
    # map is never materialised / interleaved inside the kernel.
    outs = []
    for po in range(2):
        for qo in range(2):
            taps4 = []
            for dy in (-1, 0, 1):
                par_h, sh = (po + dy) % 2, (po + dy) // 2
                for dx in (-1, 0, 1):
                    par_w, sw = (qo + dx) % 2, (qo + dx) // 2
                    taps4.append(tap(zn[par_h * 2 + par_w], sh, sw))
            patch4 = jnp.concatenate(taps4, axis=0)             # (9*C, npos)
            outs.append(jnp.dot(w4_ref[...], patch4,
                                preferred_element_type=jnp.float32))  # (C, npos)
    # joint InstanceNorm statistics across the 4 phases (= all full-res positions)
    inv = 1.0 / (4.0 * npos)
    mean4 = sum(jnp.sum(p, axis=-1, keepdims=True) for p in outs) * inv
    var4 = sum(jnp.sum((p - mean4) * (p - mean4), axis=-1, keepdims=True)
               for p in outs) * inv
    rstd4 = lax.rsqrt(var4 + EPS)
    for ph, p in enumerate(outs):                               # 256-lane aligned stores
        o_ref[0, :, ph * npos:(ph + 1) * npos] = jnp.maximum((p - mean4) * rstd4, 0.0)


def _mixffm_pallas(xg, masks, w1, w2, w3, w4, *, hm, wm, c):
    n = xg.shape[0]
    npos = hm * wm
    kernel = functools.partial(_mixffm_fused_kernel, hm=hm, wm=wm, c=c)
    return pl.pallas_call(
        kernel,
        out_shape=jax.ShapeDtypeStruct((n, c, 4 * npos), jnp.float32),
        grid=(n,),
        in_specs=[
            pl.BlockSpec((1, 4, c, npos), lambda i: (i, 0, 0, 0)),
            pl.BlockSpec(masks.shape, lambda i: (0, 0, 0)),
            pl.BlockSpec(w1.shape, lambda i: (0, 0)),
            pl.BlockSpec(w2.shape, lambda i: (0, 0)),
            pl.BlockSpec(w3.shape, lambda i: (0, 0)),
            pl.BlockSpec(w4.shape, lambda i: (0, 0)),
        ],
        out_specs=pl.BlockSpec((1, c, 4 * npos), lambda i: (i, 0, 0)),
        compiler_params=pltpu.CompilerParams(
            dimension_semantics=("parallel",)),   # batch images are independent
    )(xg, masks, w1, w2, w3, w4)


# --------------------------------------------------------------------------
# Host-side glue: weight folding into lane-dense matmul layouts + masks
# --------------------------------------------------------------------------
def _fold_w1(w, c):
    # (d, C, 4, 4) OIHW -> (DP, 16*C); column = (kh*4+kw)*C + ci, rows d..DP-1 zero
    d = w.shape[0]
    wl = jnp.transpose(w, (0, 2, 3, 1)).reshape(d, 16 * c)
    return jnp.pad(wl, ((0, DP - d), (0, 0)))


def _fold_w2(w):
    # (d, d, 3, 3) -> (DP, 9*DP); column = (kh*3+kw)*DP + ci
    d = w.shape[0]
    wl = jnp.transpose(w, (0, 2, 3, 1))                          # (d, 3, 3, d)
    wl = jnp.pad(wl, ((0, DP - d), (0, 0), (0, 0), (0, DP - d)))
    return wl.reshape(DP, 9 * DP)


def _fold_w3(wt, c):
    # ConvTranspose weight (d, C, 4, 4) -> combined sub-pixel weight (4*C, 9*DP)
    # row = (po*2+qo)*C + o ; col = ((a+1)*3+(b+1))*DP + ci ; zero where a phase
    # does not use a shift.  Phase (po): a=0 -> kh used, a=-1/+1 per parity.
    d = wt.shape[0]
    KH = {(0, -1): 3, (0, 0): 1, (1, 0): 2, (1, 1): 0}           # (parity, shift) -> k
    w3 = jnp.zeros((4 * c, 9 * DP), jnp.float32)
    for po in range(2):
        for qo in range(2):
            ph = po * 2 + qo
            for a in (-1, 0, 1):
                if (po, a) not in KH:
                    continue
                for b in (-1, 0, 1):
                    if (qo, b) not in KH:
                        continue
                    kh, kw = KH[(po, a)], KH[(qo, b)]
                    t = (a + 1) * 3 + (b + 1)
                    blk = jnp.transpose(wt[:, :, kh, kw], (1, 0))    # (C, d) = [o, ci]
                    w3 = w3.at[ph * c:(ph + 1) * c, t * DP:t * DP + d].set(blk)
    return w3


def _fold_w4(w, c):
    # (C, C, 3, 3) -> (C, 9*C); column = (kh*3+kw)*C + ci
    return jnp.transpose(w, (0, 2, 3, 1)).reshape(c, 9 * c)


def _shift_masks(hm, wm):
    # mask[(di+1)*3+(dj+1), 0, p] = 1 iff (row(p)+di, col(p)+dj) stays on the map
    npos = hm * wm
    m = np.arange(npos) // wm
    n = np.arange(npos) % wm
    out = np.zeros((9, 1, npos), np.float32)
    for di in (-1, 0, 1):
        for dj in (-1, 0, 1):
            ok = (m + di >= 0) & (m + di < hm) & (n + dj >= 0) & (n + dj < wm)
            out[(di + 1) * 3 + (dj + 1), 0, :] = ok.astype(np.float32)
    return jnp.asarray(out)


# --------------------------------------------------------------------------
# Deterministic parameter init (shapes from MixFFM.__init__)
# --------------------------------------------------------------------------
def init_params(key, channle=8, reduction=4):
    d = max(int(channle / reduction), 4)
    ks = jax.random.split(key, 4)
    params = {
        # conv_squeeze_0: Conv2d(C, C, 3, padding=1, bias=False)
        "w_sq": 0.1 * jax.random.normal(ks[0], (channle, channle, 3, 3), jnp.float32),
        # gcap[0]: Conv2d(C, d, 4, stride=2, padding=1, bias=False)
        "w_g1": 0.1 * jax.random.normal(ks[1], (d, channle, 4, 4), jnp.float32),
        # gcap[3]: Conv2d(d, d, 3, stride=1, padding=1, bias=False)
        "w_g2": 0.1 * jax.random.normal(ks[2], (d, d, 3, 3), jnp.float32),
        # gcap[6]: ConvTranspose2d(d, C, 4, stride=2, padding=1): weight (Cin, Cout, k, k)
        # (its default bias is omitted: a per-channel constant added before an
        #  affine=False InstanceNorm is exactly cancelled by the mean subtraction)
        "w_g3t": 0.1 * jax.random.normal(ks[3], (d, channle, 4, 4), jnp.float32),
    }
    return params, d


# --------------------------------------------------------------------------
# MixFFM forward
# --------------------------------------------------------------------------
@jax.jit
def _mixffm_tensor(f1_nchw, params):
    x = f1_nchw.astype(jnp.float32)
    n, c, h, w = x.shape
    assert h % 2 == 0 and w % 2 == 0 and c % 8 == 0
    hm, wm = h // 2, w // 2
    npos = hm * wm
    d = params["w_g1"].shape[0]
    assert d <= DP

    # Only host-side data prep: space-to-depth of the input (one transpose);
    # xg[n, ph*2+pw, ci, m*wm+j] = x[n, ci, 2m+ph, 2j+pw].
    xg = (x.reshape(n, c, hm, 2, wm, 2)
           .transpose(0, 3, 5, 1, 2, 4)
           .reshape(n, 4, c, npos))

    w1 = _fold_w1(params["w_g1"], c)        # (DP, 16*C)
    w2 = _fold_w2(params["w_g2"])           # (DP, 9*DP)
    w3 = _fold_w3(params["w_g3t"], c)       # (4*C, 9*DP)
    w4 = _fold_w4(params["w_sq"], c)        # (C, 9*C)
    masks = _shift_masks(hm, wm)            # (9, 1, npos)

    out = _mixffm_pallas(xg, masks, w1, w2, w3, w4, hm=hm, wm=wm, c=c)
    # depth-to-space of the phase-major kernel output -> NCHW
    return (out.reshape(n, c, 2, 2, hm, wm)
               .transpose(0, 1, 4, 2, 5, 3)
               .reshape(n, c, h, w))


def mixffm_forward(f1_nchw, f2_nchw, params):
    # In the original forward, f2 and the sigmoid-gated fusion only feed an
    # expression that is immediately overwritten, so outputs don't depend on f2.
    del f2_nchw
    out = _mixffm_tensor(f1_nchw, params)
    score_att = 0
    return out, score_att


# --------------------------------------------------------------------------
# Pure-JAX reference (lax.conv_general_dilated) for verification
# --------------------------------------------------------------------------
def _ref_in_relu(x):
    mean = jnp.mean(x, axis=(1, 2), keepdims=True)
    var = jnp.mean(jnp.square(x - mean), axis=(1, 2), keepdims=True)
    return jnp.maximum((x - mean) * lax.rsqrt(var + EPS), 0.0)


def _ref_conv(x, w_oihw, stride, pad, lhs_dilation=1):
    return lax.conv_general_dilated(
        x, jnp.transpose(w_oihw, (2, 3, 1, 0)),
        window_strides=(stride, stride),
        padding=((pad, pad), (pad, pad)),
        lhs_dilation=(lhs_dilation, lhs_dilation),
        dimension_numbers=("NHWC", "HWIO", "NHWC"))


def mixffm_reference(f1_nchw, params):
    x = jnp.transpose(f1_nchw, (0, 2, 3, 1)).astype(jnp.float32)
    y = _ref_in_relu(_ref_conv(x, params["w_g1"], 2, 1))
    y = _ref_in_relu(_ref_conv(y, params["w_g2"], 1, 1))
    w3 = jnp.transpose(jnp.flip(params["w_g3t"], axis=(2, 3)), (1, 0, 2, 3))
    y = _ref_in_relu(_ref_conv(y, w3, 1, 2, lhs_dilation=2))
    y = _ref_in_relu(_ref_conv(y, params["w_sq"], 1, 1))
    return jnp.transpose(y, (0, 3, 1, 2))


if __name__ == "__main__":
    # H=W=32 so the half-res map has Hm*Wm = 256 lanes (multiple of 128): all
    # lane rotations / stores are on fully lane-aligned arrays; d = max(C/4,4)=4.
    N, C, H, W = 2, 8, 32, 32
    key = jax.random.PRNGKey(0)
    kp, k1, k2 = jax.random.split(key, 3)
    params, d = init_params(kp, channle=C, reduction=4)
    f1 = jax.random.normal(k1, (N, C, H, W), jnp.float32)
    f2 = jax.random.normal(k2, (N, C, H, W), jnp.float32)

    out, score_att = mixffm_forward(f1, f2, params)
    out = jax.block_until_ready(out)
    assert out.shape == (N, C, H, W)
    assert score_att == 0

    ref = jax.block_until_ready(mixffm_reference(f1, params))
    np.testing.assert_allclose(np.asarray(out), np.asarray(ref),
                               atol=1e-3, rtol=1e-3)
    print("KERNEL_OK")
</pallas_src>

<mosaic_0001>
module attributes {stable_mosaic.version = 11 : i64} {
  func.func @_mixffm_fused_kernel(%arg0: i32, %arg1: memref<1x4x8x256xf32, #tpu.memory_space<vmem>>, %arg2: memref<9x1x256xf32, #tpu.memory_space<vmem>>, %arg3: memref<8x128xf32, #tpu.memory_space<vmem>>, %arg4: memref<8x72xf32, #tpu.memory_space<vmem>>, %arg5: memref<32x72xf32, #tpu.memory_space<vmem>>, %arg6: memref<8x72xf32, #tpu.memory_space<vmem>>, %arg7: memref<1x8x1024xf32, #tpu.memory_space<vmem>>) attributes {dimension_semantics = [#tpu.dimension_semantics<parallel>], iteration_bounds = array<i64: 2>, scalar_prefetch = 0 : i64, scratch_operands = 0 : i64, tpu.core_type = #tpu.core_type<tc>, window_params = [{transform_indices = @transform_0, window_bounds = array<i64: 1, 4, 8, 256>}, {pipeline_mode = #tpu.pipeline_mode<synchronous>, transform_indices = @transform_1, window_bounds = array<i64: 9, 1, 256>}, {pipeline_mode = #tpu.pipeline_mode<synchronous>, transform_indices = @transform_2, window_bounds = array<i64: 8, 128>}, {pipeline_mode = #tpu.pipeline_mode<synchronous>, transform_indices = @transform_3, window_bounds = array<i64: 8, 72>}, {pipeline_mode = #tpu.pipeline_mode<synchronous>, transform_indices = @transform_4, window_bounds = array<i64: 32, 72>}, {pipeline_mode = #tpu.pipeline_mode<synchronous>, transform_indices = @transform_5, window_bounds = array<i64: 8, 72>}, {transform_indices = @transform_6, window_bounds = array<i64: 1, 8, 1024>}]} {
    %c0 = arith.constant 0 : index
    %c0_0 = arith.constant 0 : index
    %c0_1 = arith.constant 0 : index
    %0 = vector.load %arg2[%c0, %c0_0, %c0_1] : memref<9x1x256xf32, #tpu.memory_space<vmem>>, vector<1x1x256xf32>
    %1 = vector.shape_cast %0 : vector<1x1x256xf32> to vector<1x256xf32>
    %c1 = arith.constant 1 : index
    %c0_2 = arith.constant 0 : index
    %c0_3 = arith.constant 0 : index
    %2 = vector.load %arg2[%c1, %c0_2, %c0_3] : memref<9x1x256xf32, #tpu.memory_space<vmem>>, vector<1x1x256xf32>
    %3 = vector.shape_cast %2 : vector<1x1x256xf32> to vector<1x256xf32>
    %c2 = arith.constant 2 : index
    %c0_4 = arith.constant 0 : index
    %c0_5 = arith.constant 0 : index
    %4 = vector.load %arg2[%c2, %c0_4, %c0_5] : memref<9x1x256xf32, #tpu.memory_space<vmem>>, vector<1x1x256xf32>
    %5 = vector.shape_cast %4 : vector<1x1x256xf32> to vector<1x256xf32>
    %c3 = arith.constant 3 : index
    %c0_6 = arith.constant 0 : index
    %c0_7 = arith.constant 0 : index
    %6 = vector.load %arg2[%c3, %c0_6, %c0_7] : memref<9x1x256xf32, #tpu.memory_space<vmem>>, vector<1x1x256xf32>
    %7 = vector.shape_cast %6 : vector<1x1x256xf32> to vector<1x256xf32>
    %c5 = arith.constant 5 : index
    %c0_8 = arith.constant 0 : index
    %c0_9 = arith.constant 0 : index
    %8 = vector.load %arg2[%c5, %c0_8, %c0_9] : memref<9x1x256xf32, #tpu.memory_space<vmem>>, vector<1x1x256xf32>
    %9 = vector.shape_cast %8 : vector<1x1x256xf32> to vector<1x256xf32>
    %c6 = arith.constant 6 : index
    %c0_10 = arith.constant 0 : index
    %c0_11 = arith.constant 0 : index
    %10 = vector.load %arg2[%c6, %c0_10, %c0_11] : memref<9x1x256xf32, #tpu.memory_space<vmem>>, vector<1x1x256xf32>
    %11 = vector.shape_cast %10 : vector<1x1x256xf32> to vector<1x256xf32>
    %c7 = arith.constant 7 : index
    %c0_12 = arith.constant 0 : index
    %c0_13 = arith.constant 0 : index
    %12 = vector.load %arg2[%c7, %c0_12, %c0_13] : memref<9x1x256xf32, #tpu.memory_space<vmem>>, vector<1x1x256xf32>
    %13 = vector.shape_cast %12 : vector<1x1x256xf32> to vector<1x256xf32>
    %c8 = arith.constant 8 : index
    %c0_14 = arith.constant 0 : index
    %c0_15 = arith.constant 0 : index
    %14 = vector.load %arg2[%c8, %c0_14, %c0_15] : memref<9x1x256xf32, #tpu.memory_space<vmem>>, vector<1x1x256xf32>
    %15 = vector.shape_cast %14 : vector<1x1x256xf32> to vector<1x256xf32>
    %c0_16 = arith.constant 0 : index
    %c0_17 = arith.constant 0 : index
    %c0_18 = arith.constant 0 : index
    %c0_19 = arith.constant 0 : index
    %16 = vector.load %arg1[%c0_16, %c0_17, %c0_18, %c0_19] : memref<1x4x8x256xf32, #tpu.memory_space<vmem>>, vector<1x1x8x256xf32>
    %17 = vector.shape_cast %16 : vector<1x1x8x256xf32> to vector<8x256xf32>
    %c0_20 = arith.constant 0 : index
    %c1_21 = arith.constant 1 : index
    %c0_22 = arith.constant 0 : index
    %c0_23 = arith.constant 0 : index
    %18 = vector.load %arg1[%c0_20, %c1_21, %c0_22, %c0_23] : memref<1x4x8x256xf32, #tpu.memory_space<vmem>>, vector<1x1x8x256xf32>
    %19 = vector.shape_cast %18 : vector<1x1x8x256xf32> to vector<8x256xf32>
    %c0_24 = arith.constant 0 : index
    %c2_25 = arith.constant 2 : index
    %c0_26 = arith.constant 0 : index
    %c0_27 = arith.constant 0 : index
    %20 = vector.load %arg1[%c0_24, %c2_25, %c0_26, %c0_27] : memref<1x4x8x256xf32, #tpu.memory_space<vmem>>, vector<1x1x8x256xf32>
    %21 = vector.shape_cast %20 : vector<1x1x8x256xf32> to vector<8x256xf32>
    %c0_28 = arith.constant 0 : index
    %c3_29 = arith.constant 3 : index
    %c0_30 = arith.constant 0 : index
    %c0_31 = arith.constant 0 : index
    %22 = vector.load %arg1[%c0_28, %c3_29, %c0_30, %c0_31] : memref<1x4x8x256xf32, #tpu.memory_space<vmem>>, vector<1x1x8x256xf32>
    %23 = vector.shape_cast %22 : vector<1x1x8x256xf32> to vector<8x256xf32>
    %c17_i32 = arith.constant 17 : i32
    %24 = tpu.dynamic_rotate %23 by %c17_i32 dim 1 : vector<8x256xf32>, i32 -> vector<8x256xf32>
    %25 = vector.broadcast %1 : vector<1x256xf32> to vector<8x256xf32>
    %26 = arith.mulf %24, %25 : vector<8x256xf32>
    %c16_i32 = arith.constant 16 : i32
    %27 = tpu.dynamic_rotate %21 by %c16_i32 dim 1 : vector<8x256xf32>, i32 -> vector<8x256xf32>
    %28 = vector.broadcast %3 : vector<1x256xf32> to vector<8x256xf32>
    %29 = arith.mulf %27, %28 : vector<8x256xf32>
    %c16_i32_32 = arith.constant 16 : i32
    %30 = tpu.dynamic_rotate %23 by %c16_i32_32 dim 1 : vector<8x256xf32>, i32 -> vector<8x256xf32>
    %31 = vector.broadcast %3 : vector<1x256xf32> to vector<8x256xf32>
    %32 = arith.mulf %30, %31 : vector<8x256xf32>
    %c15_i32 = arith.constant 15 : i32
    %33 = tpu.dynamic_rotate %21 by %c15_i32 dim 1 : vector<8x256xf32>, i32 -> vector<8x256xf32>
    %34 = vector.broadcast %5 : vector<1x256xf32> to vector<8x256xf32>
    %35 = arith.mulf %33, %34 : vector<8x256xf32>
    %c1_i32 = arith.constant 1 : i32
    %36 = tpu.dynamic_rotate %19 by %c1_i32 dim 1 : vector<8x256xf32>, i32 -> vector<8x256xf32>
    %37 = vector.broadcast %7 : vector<1x256xf32> to vector<8x256xf32>
    %38 = arith.mulf %36, %37 : vector<8x256xf32>
    %c255_i32 = arith.constant 255 : i32
    %39 = tpu.dynamic_rotate %17 by %c255_i32 dim 1 : vector<8x256xf32>, i32 -> vector<8x256xf32>
    %40 = vector.broadcast %9 : vector<1x256xf32> to vector<8x256xf32>
    %41 = arith.mulf %39, %40 : vector<8x256xf32>
    %c1_i32_33 = arith.constant 1 : i32
    %42 = tpu.dynamic_rotate %23 by %c1_i32_33 dim 1 : vector<8x256xf32>, i32 -> vector<8x256xf32>
    %43 = vector.broadcast %7 : vector<1x256xf32> to vector<8x256xf32>
    %44 = arith.mulf %42, %43 : vector<8x256xf32>
    %c255_i32_34 = arith.constant 255 : i32
    %45 = tpu.dynamic_rotate %21 by %c255_i32_34 dim 1 : vector<8x256xf32>, i32 -> vector<8x256xf32>
    %46 = vector.broadcast %9 : vector<1x256xf32> to vector<8x256xf32>
    %47 = arith.mulf %45, %46 : vector<8x256xf32>
    %c241_i32 = arith.constant 241 : i32
    %48 = tpu.dynamic_rotate %19 by %c241_i32 dim 1 : vector<8x256xf32>, i32 -> vector<8x256xf32>
    %49 = vector.broadcast %11 : vector<1x256xf32> to vector<8x256xf32>
    %50 = arith.mulf %48, %49 : vector<8x256xf32>
    %c240_i32 = arith.constant 240 : i32
    %51 = tpu.dynamic_rotate %17 by %c240_i32 dim 1 : vector<8x256xf32>, i32 -> vector<8x256xf32>
    %52 = vector.broadcast %13 : vector<1x256xf32> to vector<8x256xf32>
    %53 = arith.mulf %51, %52 : vector<8x256xf32>
    %c240_i32_35 = arith.constant 240 : i32
    %54 = tpu.dynamic_rotate %19 by %c240_i32_35 dim 1 : vector<8x256xf32>, i32 -> vector<8x256xf32>
    %55 = vector.broadcast %13 : vector<1x256xf32> to vector<8x256xf32>
    %56 = arith.mulf %54, %55 : vector<8x256xf32>
    %c239_i32 = arith.constant 239 : i32
    %57 = tpu.dynamic_rotate %17 by %c239_i32 dim 1 : vector<8x256xf32>, i32 -> vector<8x256xf32>
    %58 = vector.broadcast %15 : vector<1x256xf32> to vector<8x256xf32>
    %59 = arith.mulf %57, %58 : vector<8x256xf32>
    %60 = tpu.concatenate %26, %29, %32, %35, %38, %17, %19, %41, %44, %21, %23, %47, %50, %53, %56, %59 in 0 : vector<8x256xf32>, vector<8x256xf32>, vector<8x256xf32>, vector<8x256xf32>, vector<8x256xf32>, vector<8x256xf32>, vector<8x256xf32>, vector<8x256xf32>, vector<8x256xf32>, vector<8x256xf32>, vector<8x256xf32>, vector<8x256xf32>, vector<8x256xf32>, vector<8x256xf32>, vector<8x256xf32>, vector<8x256xf32> -> vector<128x256xf32>
    %c0_36 = arith.constant 0 : index
    %c0_37 = arith.constant 0 : index
    %61 = vector.load %arg3[%c0_36, %c0_37] : memref<8x128xf32, #tpu.memory_space<vmem>>, vector<8x128xf32>
    %cst = arith.constant dense<0.000000e+00> : vector<8x256xf32>
    %62 = tpu.matmul %61, %60, %cst {dimension_numbers = #tpu.dot_dimension_numbers<[1], [0], [0], [1], [0, 0, 1, 1], [], []>} : vector<8x128xf32>, vector<128x256xf32>, vector<8x256xf32> -> vector<8x256xf32>
    %cst_38 = arith.constant dense<0.000000e+00> : vector<8xf32>
    %63 = vector.multi_reduction <add>, %62, %cst_38 [1] : vector<8x256xf32> to vector<8xf32>
    %64 = vector.shape_cast %63 : vector<8xf32> to vector<8x1xf32>
    %cst_39 = arith.constant 3.906250e-03 : f32
    %65 = vector.broadcast %cst_39 : f32 to vector<8x1xf32>
    %66 = arith.mulf %64, %65 : vector<8x1xf32>
    %67 = vector.broadcast %66 : vector<8x1xf32> to vector<8x256xf32>
    %68 = arith.subf %62, %67 : vector<8x256xf32>
    %69 = arith.mulf %68, %68 : vector<8x256xf32>
    %cst_40 = arith.constant dense<0.000000e+00> : vector<8xf32>
    %70 = vector.multi_reduction <add>, %69, %cst_40 [1] : vector<8x256xf32> to vector<8xf32>
    %71 = vector.shape_cast %70 : vector<8xf32> to vector<8x1xf32>
    %cst_41 = arith.constant 3.906250e-03 : f32
    %72 = vector.broadcast %cst_41 : f32 to vector<8x1xf32>
    %73 = arith.mulf %71, %72 : vector<8x1xf32>
    %cst_42 = arith.constant 9.99999974E-6 : f32
    %74 = vector.broadcast %cst_42 : f32 to vector<8x1xf32>
    %75 = arith.addf %73, %74 : vector<8x1xf32>
    %76 = math.rsqrt %75 : vector<8x1xf32>
    %77 = vector.broadcast %76 : vector<8x1xf32> to vector<8x256xf32>
    %78 = arith.mulf %68, %77 : vector<8x256xf32>
    %cst_43 = arith.constant 0.000000e+00 : f32
    %79 = vector.broadcast %cst_43 : f32 to vector<8x256xf32>
    %80 = arith.maximumf %78, %79 : vector<8x256xf32>
    %c17_i32_44 = arith.constant 17 : i32
    %81 = tpu.dynamic_rotate %80 by %c17_i32_44 dim 1 : vector<8x256xf32>, i32 -> vector<8x256xf32>
    %82 = vector.broadcast %1 : vector<1x256xf32> to vector<8x256xf32>
    %83 = arith.mulf %81, %82 : vector<8x256xf32>
    %c16_i32_45 = arith.constant 16 : i32
    %84 = tpu.dynamic_rotate %80 by %c16_i32_45 dim 1 : vector<8x256xf32>, i32 -> vector<8x256xf32>
    %85 = vector.broadcast %3 : vector<1x256xf32> to vector<8x256xf32>
    %86 = arith.mulf %84, %85 : vector<8x256xf32>
    %c15_i32_46 = arith.constant 15 : i32
    %87 = tpu.dynamic_rotate %80 by %c15_i32_46 dim 1 : vector<8x256xf32>, i32 -> vector<8x256xf32>
    %88 = vector.broadcast %5 : vector<1x256xf32> to vector<8x256xf32>
    %89 = arith.mulf %87, %88 : vector<8x256xf32>
    %c1_i32_47 = arith.constant 1 : i32
    %90 = tpu.dynamic_rotate %80 by %c1_i32_47 dim 1 : vector<8x256xf32>, i32 -> vector<8x256xf32>
    %91 = vector.broadcast %7 : vector<1x256xf32> to vector<8x256xf32>
    %92 = arith.mulf %90, %91 : vector<8x256xf32>
    %c255_i32_48 = arith.constant 255 : i32
    %93 = tpu.dynamic_rotate %80 by %c255_i32_48 dim 1 : vector<8x256xf32>, i32 -> vector<8x256xf32>
    %94 = vector.broadcast %9 : vector<1x256xf32> to vector<8x256xf32>
    %95 = arith.mulf %93, %94 : vector<8x256xf32>
    %c241_i32_49 = arith.constant 241 : i32
    %96 = tpu.dynamic_rotate %80 by %c241_i32_49 dim 1 : vector<8x256xf32>, i32 -> vector<8x256xf32>
    %97 = vector.broadcast %11 : vector<1x256xf32> to vector<8x256xf32>
    %98 = arith.mulf %96, %97 : vector<8x256xf32>
    %c240_i32_50 = arith.constant 240 : i32
    %99 = tpu.dynamic_rotate %80 by %c240_i32_50 dim 1 : vector<8x256xf32>, i32 -> vector<8x256xf32>
    %100 = vector.broadcast %13 : vector<1x256xf32> to vector<8x256xf32>
    %101 = arith.mulf %99, %100 : vector<8x256xf32>
    %c239_i32_51 = arith.constant 239 : i32
    %102 = tpu.dynamic_rotate %80 by %c239_i32_51 dim 1 : vector<8x256xf32>, i32 -> vector<8x256xf32>
    %103 = vector.broadcast %15 : vector<1x256xf32> to vector<8x256xf32>
    %104 = arith.mulf %102, %103 : vector<8x256xf32>
    %105 = tpu.concatenate %83, %86, %89, %92, %80, %95, %98, %101, %104 in 0 : vector<8x256xf32>, vector<8x256xf32>, vector<8x256xf32>, vector<8x256xf32>, vector<8x256xf32>, vector<8x256xf32>, vector<8x256xf32>, vector<8x256xf32>, vector<8x256xf32> -> vector<72x256xf32>
    %c0_52 = arith.constant 0 : index
    %c0_53 = arith.constant 0 : index
    %106 = vector.load %arg4[%c0_52, %c0_53] : memref<8x72xf32, #tpu.memory_space<vmem>>, vector<8x72xf32>
    %cst_54 = arith.constant dense<0.000000e+00> : vector<8x256xf32>
    %107 = tpu.matmul %106, %105, %cst_54 {dimension_numbers = #tpu.dot_dimension_numbers<[1], [0], [0], [1], [0, 0, 1, 1], [], []>} : vector<8x72xf32>, vector<72x256xf32>, vector<8x256xf32> -> vector<8x256xf32>
    %cst_55 = arith.constant dense<0.000000e+00> : vector<8xf32>
    %108 = vector.multi_reduction <add>, %107, %cst_55 [1] : vector<8x256xf32> to vector<8xf32>
    %109 = vector.shape_cast %108 : vector<8xf32> to vector<8x1xf32>
    %cst_56 = arith.constant 3.906250e-03 : f32
    %110 = vector.broadcast %cst_56 : f32 to vector<8x1xf32>
    %111 = arith.mulf %109, %110 : vector<8x1xf32>
    %112 = vector.broadcast %111 : vector<8x1xf32> to vector<8x256xf32>
    %113 = arith.subf %107, %112 : vector<8x256xf32>
    %114 = arith.mulf %113, %113 : vector<8x256xf32>
    %cst_57 = arith.constant dense<0.000000e+00> : vector<8xf32>
    %115 = vector.multi_reduction <add>, %114, %cst_57 [1] : vector<8x256xf32> to vector<8xf32>
    %116 = vector.shape_cast %115 : vector<8xf32> to vector<8x1xf32>
    %cst_58 = arith.constant 3.906250e-03 : f32
    %117 = vector.broadcast %cst_58 : f32 to vector<8x1xf32>
    %118 = arith.mulf %116, %117 : vector<8x1xf32>
    %cst_59 = arith.constant 9.99999974E-6 : f32
    %119 = vector.broadcast %cst_59 : f32 to vector<8x1xf32>
    %120 = arith.addf %118, %119 : vector<8x1xf32>
    %121 = math.rsqrt %120 : vector<8x1xf32>
    %122 = vector.broadcast %121 : vector<8x1xf32> to vector<8x256xf32>
    %123 = arith.mulf %113, %122 : vector<8x256xf32>
    %cst_60 = arith.constant 0.000000e+00 : f32
    %124 = vector.broadcast %cst_60 : f32 to vector<8x256xf32>
    %125 = arith.maximumf %123, %124 : vector<8x256xf32>
    %c17_i32_61 = arith.constant 17 : i32
    %126 = tpu.dynamic_rotate %125 by %c17_i32_61 dim 1 : vector<8x256xf32>, i32 -> vector<8x256xf32>
    %127 = vector.broadcast %1 : vector<1x256xf32> to vector<8x256xf32>
    %128 = arith.mulf %126, %127 : vector<8x256xf32>
    %c16_i32_62 = arith.constant 16 : i32
    %129 = tpu.dynamic_rotate %125 by %c16_i32_62 dim 1 : vector<8x256xf32>, i32 -> vector<8x256xf32>
    %130 = vector.broadcast %3 : vector<1x256xf32> to vector<8x256xf32>
    %131 = arith.mulf %129, %130 : vector<8x256xf32>
    %c15_i32_63 = arith.constant 15 : i32
    %132 = tpu.dynamic_rotate %125 by %c15_i32_63 dim 1 : vector<8x256xf32>, i32 -> vector<8x256xf32>
    %133 = vector.broadcast %5 : vector<1x256xf32> to vector<8x256xf32>
    %134 = arith.mulf %132, %133 : vector<8x256xf32>
    %c1_i32_64 = arith.constant 1 : i32
    %135 = tpu.dynamic_rotate %125 by %c1_i32_64 dim 1 : vector<8x256xf32>, i32 -> vector<8x256xf32>
    %136 = vector.broadcast %7 : vector<1x256xf32> to vector<8x256xf32>
    %137 = arith.mulf %135, %136 : vector<8x256xf32>
    %c255_i32_65 = arith.constant 255 : i32
    %138 = tpu.dynamic_rotate %125 by %c255_i32_65 dim 1 : vector<8x256xf32>, i32 -> vector<8x256xf32>
    %139 = vector.broadcast %9 : vector<1x256xf32> to vector<8x256xf32>
    %140 = arith.mulf %138, %139 : vector<8x256xf32>
    %c241_i32_66 = arith.constant 241 : i32
    %141 = tpu.dynamic_rotate %125 by %c241_i32_66 dim 1 : vector<8x256xf32>, i32 -> vector<8x256xf32>
    %142 = vector.broadcast %11 : vector<1x256xf32> to vector<8x256xf32>
    %143 = arith.mulf %141, %142 : vector<8x256xf32>
    %c240_i32_67 = arith.constant 240 : i32
    %144 = tpu.dynamic_rotate %125 by %c240_i32_67 dim 1 : vector<8x256xf32>, i32 -> vector<8x256xf32>
    %145 = vector.broadcast %13 : vector<1x256xf32> to vector<8x256xf32>
    %146 = arith.mulf %144, %145 : vector<8x256xf32>
    %c239_i32_68 = arith.constant 239 : i32
    %147 = tpu.dynamic_rotate %125 by %c239_i32_68 dim 1 : vector<8x256xf32>, i32 -> vector<8x256xf32>
    %148 = vector.broadcast %15 : vector<1x256xf32> to vector<8x256xf32>
    %149 = arith.mulf %147, %148 : vector<8x256xf32>
    %150 = tpu.concatenate %128, %131, %134, %137, %125, %140, %143, %146, %149 in 0 : vector<8x256xf32>, vector<8x256xf32>, vector<8x256xf32>, vector<8x256xf32>, vector<8x256xf32>, vector<8x256xf32>, vector<8x256xf32>, vector<8x256xf32>, vector<8x256xf32> -> vector<72x256xf32>
    %c0_69 = arith.constant 0 : index
    %c0_70 = arith.constant 0 : index
    %151 = vector.load %arg5[%c0_69, %c0_70] : memref<32x72xf32, #tpu.memory_space<vmem>>, vector<32x72xf32>
    %cst_71 = arith.constant dense<0.000000e+00> : vector<32x256xf32>
    %152 = tpu.matmul %151, %150, %cst_71 {dimension_numbers = #tpu.dot_dimension_numbers<[1], [0], [0], [1], [0, 0, 1, 1], [], []>} : vector<32x72xf32>, vector<72x256xf32>, vector<32x256xf32> -> vector<32x256xf32>
    %153 = vector.shape_cast %152 : vector<32x256xf32> to vector<4x8x256xf32>
    %cst_72 = arith.constant dense<0.000000e+00> : vector<4x8xf32>
    %154 = vector.multi_reduction <add>, %153, %cst_72 [2] : vector<4x8x256xf32> to vector<4x8xf32>
    %155 = vector.shape_cast %154 : vector<4x8xf32> to vector<4x8x1xf32>
    %cst_73 = arith.constant dense<0.000000e+00> : vector<8x1xf32>
    %156 = vector.multi_reduction <add>, %155, %cst_73 [0] : vector<4x8x1xf32> to vector<8x1xf32>
    %157 = vector.shape_cast %156 : vector<8x1xf32> to vector<1x8x1xf32>
    %cst_74 = arith.constant 1.024000e+03 : f32
    %158 = vector.broadcast %cst_74 : f32 to vector<1x8x1xf32>
    %159 = arith.divf %157, %158 : vector<1x8x1xf32>
    %160 = vector.broadcast %159 : vector<1x8x1xf32> to vector<4x8x256xf32>
    %161 = arith.subf %153, %160 : vector<4x8x256xf32>
    %162 = arith.mulf %161, %161 : vector<4x8x256xf32>
    %cst_75 = arith.constant dense<0.000000e+00> : vector<4x8xf32>
    %163 = vector.multi_reduction <add>, %162, %cst_75 [2] : vector<4x8x256xf32> to vector<4x8xf32>
    %164 = vector.shape_cast %163 : vector<4x8xf32> to vector<4x8x1xf32>
    %cst_76 = arith.constant dense<0.000000e+00> : vector<8x1xf32>
    %165 = vector.multi_reduction <add>, %164, %cst_76 [0] : vector<4x8x1xf32> to vector<8x1xf32>
    %166 = vector.shape_cast %165 : vector<8x1xf32> to vector<1x8x1xf32>
    %cst_77 = arith.constant 1.024000e+03 : f32
    %167 = vector.broadcast %cst_77 : f32 to vector<1x8x1xf32>
    %168 = arith.divf %166, %167 : vector<1x8x1xf32>
    %cst_78 = arith.constant 9.99999974E-6 : f32
    %169 = vector.broadcast %cst_78 : f32 to vector<1x8x1xf32>
    %170 = arith.addf %168, %169 : vector<1x8x1xf32>
    %171 = math.rsqrt %170 : vector<1x8x1xf32>
    %172 = vector.broadcast %171 : vector<1x8x1xf32> to vector<4x8x256xf32>
    %173 = arith.mulf %161, %172 : vector<4x8x256xf32>
    %cst_79 = arith.constant 0.000000e+00 : f32
    %174 = vector.broadcast %cst_79 : f32 to vector<4x8x256xf32>
    %175 = arith.maximumf %173, %174 : vector<4x8x256xf32>
    %176 = vector.extract_strided_slice %175 {offsets = [3, 0, 0], sizes = [1, 8, 256], strides = [1, 1, 1]} : vector<4x8x256xf32> to vector<1x8x256xf32>
    %177 = vector.shape_cast %176 : vector<1x8x256xf32> to vector<8x256xf32>
    %c17_i32_80 = arith.constant 17 : i32
    %178 = tpu.dynamic_rotate %177 by %c17_i32_80 dim 1 : vector<8x256xf32>, i32 -> vector<8x256xf32>
    %179 = vector.broadcast %1 : vector<1x256xf32> to vector<8x256xf32>
    %180 = arith.mulf %178, %179 : vector<8x256xf32>
    %181 = vector.extract_strided_slice %175 {offsets = [2, 0, 0], sizes = [1, 8, 256], strides = [1, 1, 1]} : vector<4x8x256xf32> to vector<1x8x256xf32>
    %182 = vector.shape_cast %181 : vector<1x8x256xf32> to vector<8x256xf32>
    %c16_i32_81 = arith.constant 16 : i32
    %183 = tpu.dynamic_rotate %182 by %c16_i32_81 dim 1 : vector<8x256xf32>, i32 -> vector<8x256xf32>
    %184 = vector.broadcast %3 : vector<1x256xf32> to vector<8x256xf32>
    %185 = arith.mulf %183, %184 : vector<8x256xf32>
    %186 = vector.extract_strided_slice %175 {offsets = [3, 0, 0], sizes = [1, 8, 256], strides = [1, 1, 1]} : vector<4x8x256xf32> to vector<1x8x256xf32>
    %187 = vector.shape_cast %186 : vector<1x8x256xf32> to vector<8x256xf32>
    %c16_i32_82 = arith.constant 16 : i32
    %188 = tpu.dynamic_rotate %187 by %c16_i32_82 dim 1 : vector<8x256xf32>, i32 -> vector<8x256xf32>
    %189 = vector.broadcast %3 : vector<1x256xf32> to vector<8x256xf32>
    %190 = arith.mulf %188, %189 : vector<8x256xf32>
    %191 = vector.extract_strided_slice %175 {offsets = [1, 0, 0], sizes = [1, 8, 256], strides = [1, 1, 1]} : vector<4x8x256xf32> to vector<1x8x256xf32>
    %192 = vector.shape_cast %191 : vector<1x8x256xf32> to vector<8x256xf32>
    %c1_i32_83 = arith.constant 1 : i32
    %193 = tpu.dynamic_rotate %192 by %c1_i32_83 dim 1 : vector<8x256xf32>, i32 -> vector<8x256xf32>
    %194 = vector.broadcast %7 : vector<1x256xf32> to vector<8x256xf32>
    %195 = arith.mulf %193, %194 : vector<8x256xf32>
    %196 = vector.extract_strided_slice %175 {offsets = [0, 0, 0], sizes = [1, 8, 256], strides = [1, 1, 1]} : vector<4x8x256xf32> to vector<1x8x256xf32>
    %197 = vector.shape_cast %196 : vector<1x8x256xf32> to vector<8x256xf32>
    %198 = vector.extract_strided_slice %175 {offsets = [1, 0, 0], sizes = [1, 8, 256], strides = [1, 1, 1]} : vector<4x8x256xf32> to vector<1x8x256xf32>
    %199 = vector.shape_cast %198 : vector<1x8x256xf32> to vector<8x256xf32>
    %200 = vector.extract_strided_slice %175 {offsets = [3, 0, 0], sizes = [1, 8, 256], strides = [1, 1, 1]} : vector<4x8x256xf32> to vector<1x8x256xf32>
    %201 = vector.shape_cast %200 : vector<1x8x256xf32> to vector<8x256xf32>
    %c1_i32_84 = arith.constant 1 : i32
    %202 = tpu.dynamic_rotate %201 by %c1_i32_84 dim 1 : vector<8x256xf32>, i32 -> vector<8x256xf32>
    %203 = vector.broadcast %7 : vector<1x256xf32> to vector<8x256xf32>
    %204 = arith.mulf %202, %203 : vector<8x256xf32>
    %205 = vector.extract_strided_slice %175 {offsets = [2, 0, 0], sizes = [1, 8, 256], strides = [1, 1, 1]} : vector<4x8x256xf32> to vector<1x8x256xf32>
    %206 = vector.shape_cast %205 : vector<1x8x256xf32> to vector<8x256xf32>
    %207 = vector.extract_strided_slice %175 {offsets = [3, 0, 0], sizes = [1, 8, 256], strides = [1, 1, 1]} : vector<4x8x256xf32> to vector<1x8x256xf32>
    %208 = vector.shape_cast %207 : vector<1x8x256xf32> to vector<8x256xf32>
    %209 = tpu.concatenate %180, %185, %190, %195, %197, %199, %204, %206, %208 in 0 : vector<8x256xf32>, vector<8x256xf32>, vector<8x256xf32>, vector<8x256xf32>, vector<8x256xf32>, vector<8x256xf32>, vector<8x256xf32>, vector<8x256xf32>, vector<8x256xf32> -> vector<72x256xf32>
    %c0_85 = arith.constant 0 : index
    %c0_86 = arith.constant 0 : index
    %210 = vector.load %arg6[%c0_85, %c0_86] : memref<8x72xf32, #tpu.memory_space<vmem>>, vector<8x72xf32>
    %cst_87 = arith.constant dense<0.000000e+00> : vector<8x256xf32>
    %211 = tpu.matmul %210, %209, %cst_87 {dimension_numbers = #tpu.dot_dimension_numbers<[1], [0], [0], [1], [0, 0, 1, 1], [], []>} : vector<8x72xf32>, vector<72x256xf32>, vector<8x256xf32> -> vector<8x256xf32>
    %212 = vector.extract_strided_slice %175 {offsets = [2, 0, 0], sizes = [1, 8, 256], strides = [1, 1, 1]} : vector<4x8x256xf32> to vector<1x8x256xf32>
    %213 = vector.shape_cast %212 : vector<1x8x256xf32> to vector<8x256xf32>
    %c16_i32_88 = arith.constant 16 : i32
    %214 = tpu.dynamic_rotate %213 by %c16_i32_88 dim 1 : vector<8x256xf32>, i32 -> vector<8x256xf32>
    %215 = vector.broadcast %3 : vector<1x256xf32> to vector<8x256xf32>
    %216 = arith.mulf %214, %215 : vector<8x256xf32>
    %217 = vector.extract_strided_slice %175 {offsets = [3, 0, 0], sizes = [1, 8, 256], strides = [1, 1, 1]} : vector<4x8x256xf32> to vector<1x8x256xf32>
    %218 = vector.shape_cast %217 : vector<1x8x256xf32> to vector<8x256xf32>
    %c16_i32_89 = arith.constant 16 : i32
    %219 = tpu.dynamic_rotate %218 by %c16_i32_89 dim 1 : vector<8x256xf32>, i32 -> vector<8x256xf32>
    %220 = vector.broadcast %3 : vector<1x256xf32> to vector<8x256xf32>
    %221 = arith.mulf %219, %220 : vector<8x256xf32>
    %222 = vector.extract_strided_slice %175 {offsets = [2, 0, 0], sizes = [1, 8, 256], strides = [1, 1, 1]} : vector<4x8x256xf32> to vector<1x8x256xf32>
    %223 = vector.shape_cast %222 : vector<1x8x256xf32> to vector<8x256xf32>
    %c15_i32_90 = arith.constant 15 : i32
    %224 = tpu.dynamic_rotate %223 by %c15_i32_90 dim 1 : vector<8x256xf32>, i32 -> vector<8x256xf32>
    %225 = vector.broadcast %5 : vector<1x256xf32> to vector<8x256xf32>
    %226 = arith.mulf %224, %225 : vector<8x256xf32>
    %227 = vector.extract_strided_slice %175 {offsets = [0, 0, 0], sizes = [1, 8, 256], strides = [1, 1, 1]} : vector<4x8x256xf32> to vector<1x8x256xf32>
    %228 = vector.shape_cast %227 : vector<1x8x256xf32> to vector<8x256xf32>
    %229 = vector.extract_strided_slice %175 {offsets = [1, 0, 0], sizes = [1, 8, 256], strides = [1, 1, 1]} : vector<4x8x256xf32> to vector<1x8x256xf32>
    %230 = vector.shape_cast %229 : vector<1x8x256xf32> to vector<8x256xf32>
    %231 = vector.extract_strided_slice %175 {offsets = [0, 0, 0], sizes = [1, 8, 256], strides = [1, 1, 1]} : vector<4x8x256xf32> to vector<1x8x256xf32>
    %232 = vector.shape_cast %231 : vector<1x8x256xf32> to vector<8x256xf32>
    %c255_i32_91 = arith.constant 255 : i32
    %233 = tpu.dynamic_rotate %232 by %c255_i32_91 dim 1 : vector<8x256xf32>, i32 -> vector<8x256xf32>
    %234 = vector.broadcast %9 : vector<1x256xf32> to vector<8x256xf32>
    %235 = arith.mulf %233, %234 : vector<8x256xf32>
    %236 = vector.extract_strided_slice %175 {offsets = [2, 0, 0], sizes = [1, 8, 256], strides = [1, 1, 1]} : vector<4x8x256xf32> to vector<1x8x256xf32>
    %237 = vector.shape_cast %236 : vector<1x8x256xf32> to vector<8x256xf32>
    %238 = vector.extract_strided_slice %175 {offsets = [3, 0, 0], sizes = [1, 8, 256], strides = [1, 1, 1]} : vector<4x8x256xf32> to vector<1x8x256xf32>
    %239 = vector.shape_cast %238 : vector<1x8x256xf32> to vector<8x256xf32>
    %240 = vector.extract_strided_slice %175 {offsets = [2, 0, 0], sizes = [1, 8, 256], strides = [1, 1, 1]} : vector<4x8x256xf32> to vector<1x8x256xf32>
    %241 = vector.shape_cast %240 : vector<1x8x256xf32> to vector<8x256xf32>
    %c255_i32_92 = arith.constant 255 : i32
    %242 = tpu.dynamic_rotate %241 by %c255_i32_92 dim 1 : vector<8x256xf32>, i32 -> vector<8x256xf32>
    %243 = vector.broadcast %9 : vector<1x256xf32> to vector<8x256xf32>
    %244 = arith.mulf %242, %243 : vector<8x256xf32>
    %245 = tpu.concatenate %216, %221, %226, %228, %230, %235, %237, %239, %244 in 0 : vector<8x256xf32>, vector<8x256xf32>, vector<8x256xf32>, vector<8x256xf32>, vector<8x256xf32>, vector<8x256xf32>, vector<8x256xf32>, vector<8x256xf32>, vector<8x256xf32> -> vector<72x256xf32>
    %c0_93 = arith.constant 0 : index
    %c0_94 = arith.constant 0 : index
    %246 = vector.load %arg6[%c0_93, %c0_94] : memref<8x72xf32, #tpu.memory_space<vmem>>, vector<8x72xf32>
    %cst_95 = arith.constant dense<0.000000e+00> : vector<8x256xf32>
    %247 = tpu.matmul %246, %245, %cst_95 {dimension_numbers = #tpu.dot_dimension_numbers<[1], [0], [0], [1], [0, 0, 1, 1], [], []>} : vector<8x72xf32>, vector<72x256xf32>, vector<8x256xf32> -> vector<8x256xf32>
    %248 = vector.extract_strided_slice %175 {offsets = [1, 0, 0], sizes = [1, 8, 256], strides = [1, 1, 1]} : vector<4x8x256xf32> to vector<1x8x256xf32>
    %249 = vector.shape_cast %248 : vector<1x8x256xf32> to vector<8x256xf32>
    %c1_i32_96 = arith.constant 1 : i32
    %250 = tpu.dynamic_rotate %249 by %c1_i32_96 dim 1 : vector<8x256xf32>, i32 -> vector<8x256xf32>
    %251 = vector.broadcast %7 : vector<1x256xf32> to vector<8x256xf32>
    %252 = arith.mulf %250, %251 : vector<8x256xf32>
    %253 = vector.extract_strided_slice %175 {offsets = [0, 0, 0], sizes = [1, 8, 256], strides = [1, 1, 1]} : vector<4x8x256xf32> to vector<1x8x256xf32>
    %254 = vector.shape_cast %253 : vector<1x8x256xf32> to vector<8x256xf32>
    %255 = vector.extract_strided_slice %175 {offsets = [1, 0, 0], sizes = [1, 8, 256], strides = [1, 1, 1]} : vector<4x8x256xf32> to vector<1x8x256xf32>
    %256 = vector.shape_cast %255 : vector<1x8x256xf32> to vector<8x256xf32>
    %257 = vector.extract_strided_slice %175 {offsets = [3, 0, 0], sizes = [1, 8, 256], strides = [1, 1, 1]} : vector<4x8x256xf32> to vector<1x8x256xf32>
    %258 = vector.shape_cast %257 : vector<1x8x256xf32> to vector<8x256xf32>
    %c1_i32_97 = arith.constant 1 : i32
    %259 = tpu.dynamic_rotate %258 by %c1_i32_97 dim 1 : vector<8x256xf32>, i32 -> vector<8x256xf32>
    %260 = vector.broadcast %7 : vector<1x256xf32> to vector<8x256xf32>
    %261 = arith.mulf %259, %260 : vector<8x256xf32>
    %262 = vector.extract_strided_slice %175 {offsets = [2, 0, 0], sizes = [1, 8, 256], strides = [1, 1, 1]} : vector<4x8x256xf32> to vector<1x8x256xf32>
    %263 = vector.shape_cast %262 : vector<1x8x256xf32> to vector<8x256xf32>
    %264 = vector.extract_strided_slice %175 {offsets = [3, 0, 0], sizes = [1, 8, 256], strides = [1, 1, 1]} : vector<4x8x256xf32> to vector<1x8x256xf32>
    %265 = vector.shape_cast %264 : vector<1x8x256xf32> to vector<8x256xf32>
    %266 = vector.extract_strided_slice %175 {offsets = [1, 0, 0], sizes = [1, 8, 256], strides = [1, 1, 1]} : vector<4x8x256xf32> to vector<1x8x256xf32>
    %267 = vector.shape_cast %266 : vector<1x8x256xf32> to vector<8x256xf32>
    %c241_i32_98 = arith.constant 241 : i32
    %268 = tpu.dynamic_rotate %267 by %c241_i32_98 dim 1 : vector<8x256xf32>, i32 -> vector<8x256xf32>
    %269 = vector.broadcast %11 : vector<1x256xf32> to vector<8x256xf32>
    %270 = arith.mulf %268, %269 : vector<8x256xf32>
    %271 = vector.extract_strided_slice %175 {offsets = [0, 0, 0], sizes = [1, 8, 256], strides = [1, 1, 1]} : vector<4x8x256xf32> to vector<1x8x256xf32>
    %272 = vector.shape_cast %271 : vector<1x8x256xf32> to vector<8x256xf32>
    %c240_i32_99 = arith.constant 240 : i32
    %273 = tpu.dynamic_rotate %272 by %c240_i32_99 dim 1 : vector<8x256xf32>, i32 -> vector<8x256xf32>
    %274 = vector.broadcast %13 : vector<1x256xf32> to vector<8x256xf32>
    %275 = arith.mulf %273, %274 : vector<8x256xf32>
    %276 = vector.extract_strided_slice %175 {offsets = [1, 0, 0], sizes = [1, 8, 256], strides = [1, 1, 1]} : vector<4x8x256xf32> to vector<1x8x256xf32>
    %277 = vector.shape_cast %276 : vector<1x8x256xf32> to vector<8x256xf32>
    %c240_i32_100 = arith.constant 240 : i32
    %278 = tpu.dynamic_rotate %277 by %c240_i32_100 dim 1 : vector<8x256xf32>, i32 -> vector<8x256xf32>
    %279 = vector.broadcast %13 : vector<1x256xf32> to vector<8x256xf32>
    %280 = arith.mulf %278, %279 : vector<8x256xf32>
    %281 = tpu.concatenate %252, %254, %256, %261, %263, %265, %270, %275, %280 in 0 : vector<8x256xf32>, vector<8x256xf32>, vector<8x256xf32>, vector<8x256xf32>, vector<8x256xf32>, vector<8x256xf32>, vector<8x256xf32>, vector<8x256xf32>, vector<8x256xf32> -> vector<72x256xf32>
    %c0_101 = arith.constant 0 : index
    %c0_102 = arith.constant 0 : index
    %282 = vector.load %arg6[%c0_101, %c0_102] : memref<8x72xf32, #tpu.memory_space<vmem>>, vector<8x72xf32>
    %cst_103 = arith.constant dense<0.000000e+00> : vector<8x256xf32>
    %283 = tpu.matmul %282, %281, %cst_103 {dimension_numbers = #tpu.dot_dimension_numbers<[1], [0], [0], [1], [0, 0, 1, 1], [], []>} : vector<8x72xf32>, vector<72x256xf32>, vector<8x256xf32> -> vector<8x256xf32>
    %284 = vector.extract_strided_slice %175 {offsets = [0, 0, 0], sizes = [1, 8, 256], strides = [1, 1, 1]} : vector<4x8x256xf32> to vector<1x8x256xf32>
    %285 = vector.shape_cast %284 : vector<1x8x256xf32> to vector<8x256xf32>
    %286 = vector.extract_strided_slice %175 {offsets = [1, 0, 0], sizes = [1, 8, 256], strides = [1, 1, 1]} : vector<4x8x256xf32> to vector<1x8x256xf32>
    %287 = vector.shape_cast %286 : vector<1x8x256xf32> to vector<8x256xf32>
    %288 = vector.extract_strided_slice %175 {offsets = [0, 0, 0], sizes = [1, 8, 256], strides = [1, 1, 1]} : vector<4x8x256xf32> to vector<1x8x256xf32>
    %289 = vector.shape_cast %288 : vector<1x8x256xf32> to vector<8x256xf32>
    %c255_i32_104 = arith.constant 255 : i32
    %290 = tpu.dynamic_rotate %289 by %c255_i32_104 dim 1 : vector<8x256xf32>, i32 -> vector<8x256xf32>
    %291 = vector.broadcast %9 : vector<1x256xf32> to vector<8x256xf32>
    %292 = arith.mulf %290, %291 : vector<8x256xf32>
    %293 = vector.extract_strided_slice %175 {offsets = [2, 0, 0], sizes = [1, 8, 256], strides = [1, 1, 1]} : vector<4x8x256xf32> to vector<1x8x256xf32>
    %294 = vector.shape_cast %293 : vector<1x8x256xf32> to vector<8x256xf32>
    %295 = vector.extract_strided_slice %175 {offsets = [3, 0, 0], sizes = [1, 8, 256], strides = [1, 1, 1]} : vector<4x8x256xf32> to vector<1x8x256xf32>
    %296 = vector.shape_cast %295 : vector<1x8x256xf32> to vector<8x256xf32>
    %297 = vector.extract_strided_slice %175 {offsets = [2, 0, 0], sizes = [1, 8, 256], strides = [1, 1, 1]} : vector<4x8x256xf32> to vector<1x8x256xf32>
    %298 = vector.shape_cast %297 : vector<1x8x256xf32> to vector<8x256xf32>
    %c255_i32_105 = arith.constant 255 : i32
    %299 = tpu.dynamic_rotate %298 by %c255_i32_105 dim 1 : vector<8x256xf32>, i32 -> vector<8x256xf32>
    %300 = vector.broadcast %9 : vector<1x256xf32> to vector<8x256xf32>
    %301 = arith.mulf %299, %300 : vector<8x256xf32>
    %302 = vector.extract_strided_slice %175 {offsets = [0, 0, 0], sizes = [1, 8, 256], strides = [1, 1, 1]} : vector<4x8x256xf32> to vector<1x8x256xf32>
    %303 = vector.shape_cast %302 : vector<1x8x256xf32> to vector<8x256xf32>
    %c240_i32_106 = arith.constant 240 : i32
    %304 = tpu.dynamic_rotate %303 by %c240_i32_106 dim 1 : vector<8x256xf32>, i32 -> vector<8x256xf32>
    %305 = vector.broadcast %13 : vector<1x256xf32> to vector<8x256xf32>
    %306 = arith.mulf %304, %305 : vector<8x256xf32>
    %307 = vector.extract_strided_slice %175 {offsets = [1, 0, 0], sizes = [1, 8, 256], strides = [1, 1, 1]} : vector<4x8x256xf32> to vector<1x8x256xf32>
    %308 = vector.shape_cast %307 : vector<1x8x256xf32> to vector<8x256xf32>
    %c240_i32_107 = arith.constant 240 : i32
    %309 = tpu.dynamic_rotate %308 by %c240_i32_107 dim 1 : vector<8x256xf32>, i32 -> vector<8x256xf32>
    %310 = vector.broadcast %13 : vector<1x256xf32> to vector<8x256xf32>
    %311 = arith.mulf %309, %310 : vector<8x256xf32>
    %312 = vector.extract_strided_slice %175 {offsets = [0, 0, 0], sizes = [1, 8, 256], strides = [1, 1, 1]} : vector<4x8x256xf32> to vector<1x8x256xf32>
    %313 = vector.shape_cast %312 : vector<1x8x256xf32> to vector<8x256xf32>
    %c239_i32_108 = arith.constant 239 : i32
    %314 = tpu.dynamic_rotate %313 by %c239_i32_108 dim 1 : vector<8x256xf32>, i32 -> vector<8x256xf32>
    %315 = vector.broadcast %15 : vector<1x256xf32> to vector<8x256xf32>
    %316 = arith.mulf %314, %315 : vector<8x256xf32>
    %317 = tpu.concatenate %285, %287, %292, %294, %296, %301, %306, %311, %316 in 0 : vector<8x256xf32>, vector<8x256xf32>, vector<8x256xf32>, vector<8x256xf32>, vector<8x256xf32>, vector<8x256xf32>, vector<8x256xf32>, vector<8x256xf32>, vector<8x256xf32> -> vector<72x256xf32>
    %c0_109 = arith.constant 0 : index
    %c0_110 = arith.constant 0 : index
    %318 = vector.load %arg6[%c0_109, %c0_110] : memref<8x72xf32, #tpu.memory_space<vmem>>, vector<8x72xf32>
    %cst_111 = arith.constant dense<0.000000e+00> : vector<8x256xf32>
    %319 = tpu.matmul %318, %317, %cst_111 {dimension_numbers = #tpu.dot_dimension_numbers<[1], [0], [0], [1], [0, 0, 1, 1], [], []>} : vector<8x72xf32>, vector<72x256xf32>, vector<8x256xf32> -> vector<8x256xf32>
    %cst_112 = arith.constant dense<0.000000e+00> : vector<8xf32>
    %320 = vector.multi_reduction <add>, %211, %cst_112 [1] : vector<8x256xf32> to vector<8xf32>
    %321 = vector.shape_cast %320 : vector<8xf32> to vector<8x1xf32>
    %cst_113 = arith.constant 0.000000e+00 : f32
    %322 = vector.broadcast %cst_113 : f32 to vector<8x1xf32>
    %323 = arith.addf %322, %321 : vector<8x1xf32>
    %cst_114 = arith.constant dense<0.000000e+00> : vector<8xf32>
    %324 = vector.multi_reduction <add>, %247, %cst_114 [1] : vector<8x256xf32> to vector<8xf32>
    %325 = vector.shape_cast %324 : vector<8xf32> to vector<8x1xf32>
    %326 = arith.addf %323, %325 : vector<8x1xf32>
    %cst_115 = arith.constant dense<0.000000e+00> : vector<8xf32>
    %327 = vector.multi_reduction <add>, %283, %cst_115 [1] : vector<8x256xf32> to vector<8xf32>
    %328 = vector.shape_cast %327 : vector<8xf32> to vector<8x1xf32>
    %329 = arith.addf %326, %328 : vector<8x1xf32>
    %cst_116 = arith.constant dense<0.000000e+00> : vector<8xf32>
    %330 = vector.multi_reduction <add>, %319, %cst_116 [1] : vector<8x256xf32> to vector<8xf32>
    %331 = vector.shape_cast %330 : vector<8xf32> to vector<8x1xf32>
    %332 = arith.addf %329, %331 : vector<8x1xf32>
    %cst_117 = arith.constant 9.765625E-4 : f32
    %333 = vector.broadcast %cst_117 : f32 to vector<8x1xf32>
    %334 = arith.mulf %332, %333 : vector<8x1xf32>
    %335 = vector.broadcast %334 : vector<8x1xf32> to vector<8x256xf32>
    %336 = arith.subf %211, %335 : vector<8x256xf32>
    %337 = vector.broadcast %334 : vector<8x1xf32> to vector<8x256xf32>
    %338 = arith.subf %211, %337 : vector<8x256xf32>
    %339 = arith.mulf %336, %338 : vector<8x256xf32>
    %cst_118 = arith.constant dense<0.000000e+00> : vector<8xf32>
    %340 = vector.multi_reduction <add>, %339, %cst_118 [1] : vector<8x256xf32> to vector<8xf32>
    %341 = vector.shape_cast %340 : vector<8xf32> to vector<8x1xf32>
    %cst_119 = arith.constant 0.000000e+00 : f32
    %342 = vector.broadcast %cst_119 : f32 to vector<8x1xf32>
    %343 = arith.addf %342, %341 : vector<8x1xf32>
    %344 = vector.broadcast %334 : vector<8x1xf32> to vector<8x256xf32>
    %345 = arith.subf %247, %344 : vector<8x256xf32>
    %346 = vector.broadcast %334 : vector<8x1xf32> to vector<8x256xf32>
    %347 = arith.subf %247, %346 : vector<8x256xf32>
    %348 = arith.mulf %345, %347 : vector<8x256xf32>
    %cst_120 = arith.constant dense<0.000000e+00> : vector<8xf32>
    %349 = vector.multi_reduction <add>, %348, %cst_120 [1] : vector<8x256xf32> to vector<8xf32>
    %350 = vector.shape_cast %349 : vector<8xf32> to vector<8x1xf32>
    %351 = arith.addf %343, %350 : vector<8x1xf32>
    %352 = vector.broadcast %334 : vector<8x1xf32> to vector<8x256xf32>
    %353 = arith.subf %283, %352 : vector<8x256xf32>
    %354 = vector.broadcast %334 : vector<8x1xf32> to vector<8x256xf32>
    %355 = arith.subf %283, %354 : vector<8x256xf32>
    %356 = arith.mulf %353, %355 : vector<8x256xf32>
    %cst_121 = arith.constant dense<0.000000e+00> : vector<8xf32>
    %357 = vector.multi_reduction <add>, %356, %cst_121 [1] : vector<8x256xf32> to vector<8xf32>
    %358 = vector.shape_cast %357 : vector<8xf32> to vector<8x1xf32>
    %359 = arith.addf %351, %358 : vector<8x1xf32>
    %360 = vector.broadcast %334 : vector<8x1xf32> to vector<8x256xf32>
    %361 = arith.subf %319, %360 : vector<8x256xf32>
    %362 = vector.broadcast %334 : vector<8x1xf32> to vector<8x256xf32>
    %363 = arith.subf %319, %362 : vector<8x256xf32>
    %364 = arith.mulf %361, %363 : vector<8x256xf32>
    %cst_122 = arith.constant dense<0.000000e+00> : vector<8xf32>
    %365 = vector.multi_reduction <add>, %364, %cst_122 [1] : vector<8x256xf32> to vector<8xf32>
    %366 = vector.shape_cast %365 : vector<8xf32> to vector<8x1xf32>
    %367 = arith.addf %359, %366 : vector<8x1xf32>
    %cst_123 = arith.constant 9.765625E-4 : f32
    %368 = vector.broadcast %cst_123 : f32 to vector<8x1xf32>
    %369 = arith.mulf %367, %368 : vector<8x1xf32>
    %cst_124 = arith.constant 9.99999974E-6 : f32
    %370 = vector.broadcast %cst_124 : f32 to vector<8x1xf32>
    %371 = arith.addf %369, %370 : vector<8x1xf32>
    %372 = math.rsqrt %371 : vector<8x1xf32>
    %373 = vector.broadcast %334 : vector<8x1xf32> to vector<8x256xf32>
    %374 = arith.subf %211, %373 : vector<8x256xf32>
    %375 = vector.broadcast %372 : vector<8x1xf32> to vector<8x256xf32>
    %376 = arith.mulf %374, %375 : vector<8x256xf32>
    %cst_125 = arith.constant 0.000000e+00 : f32
    %377 = vector.broadcast %cst_125 : f32 to vector<8x256xf32>
    %378 = arith.maximumf %376, %377 : vector<8x256xf32>
    %c0_126 = arith.constant 0 : index
    %c0_127 = arith.constant 0 : index
    %c0_128 = arith.constant 0 : index
    %379 = vector.load %arg7[%c0_126, %c0_127, %c0_128] : memref<1x8x1024xf32, #tpu.memory_space<vmem>>, vector<1x8x256xf32>
    %380 = vector.shape_cast %379 : vector<1x8x256xf32> to vector<8x256xf32>
    %381 = vector.shape_cast %378 : vector<8x256xf32> to vector<1x8x256xf32>
    tpu.vector_store %arg7[%c0_126, %c0_127, %c0_128], %381 {strides = array<i32>} : memref<1x8x1024xf32, #tpu.memory_space<vmem>>, vector<1x8x256xf32>,
    %382 = vector.broadcast %334 : vector<8x1xf32> to vector<8x256xf32>
    %383 = arith.subf %247, %382 : vector<8x256xf32>
    %384 = vector.broadcast %372 : vector<8x1xf32> to vector<8x256xf32>
    %385 = arith.mulf %383, %384 : vector<8x256xf32>
    %cst_129 = arith.constant 0.000000e+00 : f32
    %386 = vector.broadcast %cst_129 : f32 to vector<8x256xf32>
    %387 = arith.maximumf %385, %386 : vector<8x256xf32>
    %c0_130 = arith.constant 0 : index
    %c0_131 = arith.constant 0 : index
    %c256 = arith.constant 256 : index
    %388 = vector.load %arg7[%c0_130, %c0_131, %c256] : memref<1x8x1024xf32, #tpu.memory_space<vmem>>, vector<1x8x256xf32>
    %389 = vector.shape_cast %388 : vector<1x8x256xf32> to vector<8x256xf32>
    %390 = vector.shape_cast %387 : vector<8x256xf32> to vector<1x8x256xf32>
    tpu.vector_store %arg7[%c0_130, %c0_131, %c256], %390 {strides = array<i32>} : memref<1x8x1024xf32, #tpu.memory_space<vmem>>, vector<1x8x256xf32>,
    %391 = vector.broadcast %334 : vector<8x1xf32> to vector<8x256xf32>
    %392 = arith.subf %283, %391 : vector<8x256xf32>
    %393 = vector.broadcast %372 : vector<8x1xf32> to vector<8x256xf32>
    %394 = arith.mulf %392, %393 : vector<8x256xf32>
    %cst_132 = arith.constant 0.000000e+00 : f32
    %395 = vector.broadcast %cst_132 : f32 to vector<8x256xf32>
    %396 = arith.maximumf %394, %395 : vector<8x256xf32>
    %c0_133 = arith.constant 0 : index
    %c0_134 = arith.constant 0 : index
    %c512 = arith.constant 512 : index
    %397 = vector.load %arg7[%c0_133, %c0_134, %c512] : memref<1x8x1024xf32, #tpu.memory_space<vmem>>, vector<1x8x256xf32>
    %398 = vector.shape_cast %397 : vector<1x8x256xf32> to vector<8x256xf32>
    %399 = vector.shape_cast %396 : vector<8x256xf32> to vector<1x8x256xf32>
    tpu.vector_store %arg7[%c0_133, %c0_134, %c512], %399 {strides = array<i32>} : memref<1x8x1024xf32, #tpu.memory_space<vmem>>, vector<1x8x256xf32>,
    %400 = vector.broadcast %334 : vector<8x1xf32> to vector<8x256xf32>
    %401 = arith.subf %319, %400 : vector<8x256xf32>
    %402 = vector.broadcast %372 : vector<8x1xf32> to vector<8x256xf32>
    %403 = arith.mulf %401, %402 : vector<8x256xf32>
    %cst_135 = arith.constant 0.000000e+00 : f32
    %404 = vector.broadcast %cst_135 : f32 to vector<8x256xf32>
    %405 = arith.maximumf %403, %404 : vector<8x256xf32>
    %c0_136 = arith.constant 0 : index
    %c0_137 = arith.constant 0 : index
    %c768 = arith.constant 768 : index
    %406 = vector.load %arg7[%c0_136, %c0_137, %c768] : memref<1x8x1024xf32, #tpu.memory_space<vmem>>, vector<1x8x256xf32>
    %407 = vector.shape_cast %406 : vector<1x8x256xf32> to vector<8x256xf32>
    %408 = vector.shape_cast %405 : vector<8x256xf32> to vector<1x8x256xf32>
    tpu.vector_store %arg7[%c0_136, %c0_137, %c768], %408 {strides = array<i32>} : memref<1x8x1024xf32, #tpu.memory_space<vmem>>, vector<1x8x256xf32>,
    return
  }
  func.func @transform_0(%arg0: i32) -> (i32, i32, i32, i32) {
    %c0_i32 = arith.constant 0 : i32
    %c0_i32_0 = arith.constant 0 : i32
    %c0_i32_1 = arith.constant 0 : i32
    %c0_i32_2 = arith.constant 0 : i32
    return %arg0, %c0_i32, %c0_i32_0, %c0_i32_1 : i32, i32, i32, i32
  }
  func.func @transform_1(%arg0: i32) -> (i32, i32, i32) {
    %c0_i32 = arith.constant 0 : i32
    %c0_i32_0 = arith.constant 0 : i32
    %c0_i32_1 = arith.constant 0 : i32
    %c0_i32_2 = arith.constant 0 : i32
    return %c0_i32, %c0_i32_0, %c0_i32_1 : i32, i32, i32
  }
  func.func @transform_2(%arg0: i32) -> (i32, i32) {
    %c0_i32 = arith.constant 0 : i32
    %c0_i32_0 = arith.constant 0 : i32
    %c0_i32_1 = arith.constant 0 : i32
    return %c0_i32, %c0_i32_0 : i32, i32
  }
  func.func @transform_3(%arg0: i32) -> (i32, i32) {
    %c0_i32 = arith.constant 0 : i32
    %c0_i32_0 = arith.constant 0 : i32
    %c0_i32_1 = arith.constant 0 : i32
    return %c0_i32, %c0_i32_0 : i32, i32
  }
  func.func @transform_4(%arg0: i32) -> (i32, i32) {
    %c0_i32 = arith.constant 0 : i32
    %c0_i32_0 = arith.constant 0 : i32
    %c0_i32_1 = arith.constant 0 : i32
    return %c0_i32, %c0_i32_0 : i32, i32
  }
  func.func @transform_5(%arg0: i32) -> (i32, i32) {
    %c0_i32 = arith.constant 0 : i32
    %c0_i32_0 = arith.constant 0 : i32
    %c0_i32_1 = arith.constant 0 : i32
    return %c0_i32, %c0_i32_0 : i32, i32
  }
  func.func @transform_6(%arg0: i32) -> (i32, i32, i32) {
    %c0_i32 = arith.constant 0 : i32
    %c0_i32_0 = arith.constant 0 : i32
    %c0_i32_1 = arith.constant 0 : i32
    return %arg0, %c0_i32, %c0_i32_0 : i32, i32, i32
  }
}

</mosaic_0001>

<llo_original>
// kernel: _mixffm_tensor.1
$region0: #{_mixffm_tensor.1}
  #allocation0 [shape = 'u32[]', space=smem, size = 0x4, offset = 0x4, fixed_abs, tag = 'smem constant byte address 0x4 - core index']
  #allocation1 [shape = 'u32[144,128]{1,0:T(1,128)}', space=vmem, size = 0x12000, scoped, tag = 'internal scratch']
  %s0 = inlined_call_operand.vmem [shape: f32[2,4,8,256], index: 0, kind: input, shape index: {}]
  %s1 = inlined_call_operand.vmem [shape: f32[9,1,256], index: 1, kind: input, shape index: {}]
  %s2 = inlined_call_operand.vmem [shape: f32[8,128], index: 2, kind: input, shape index: {}]
  %s3 = inlined_call_operand.vmem [shape: f32[8,72], index: 3, kind: input, shape index: {}]
  %s4 = inlined_call_operand.vmem [shape: f32[32,72], index: 4, kind: input, shape index: {}]
  %s5 = inlined_call_operand.vmem [shape: f32[8,72], index: 5, kind: input, shape index: {}]
  %s6 = inlined_call_operand.vmem [shape: f32[2,8,1024], index: 6, kind: output, shape index: {}]
  %s7 = sld [smem:[#allocation0]]
  $region57: #{_mixffm_tensor.1} parent=0
    _
  %s9 = ssub.s32 1, %s7
  %s10 = scalar_select 0, %s9, %s7
  loop: start=0, step=1, limit=4
  $region2: #{_mixffm_tensor.1} parent=0 // loop_pre_header
    _
  $region3: #{_mixffm_tensor.1} parent=0 // loop_header
    %s12 = sphi 0, %s16
    %p13 = scmp.ge.s32.totalorder %s12, 4
    %s22 = sphi 0, %s24
    %s25 = sphi 0, %s22
    %s26 = sphi 0, %s25
    %s42 = sphi 0, %s26
    %s46 = sphi 0, %s46
    %s48 = sphi 0, %s46
    %s49 = sphi 0, %s48
    %s63 = sphi 0, %s49
    %s67 = sphi 0, %s67
    %s69 = sphi 0, %s67
    %s70 = sphi 0, %s69
    %s84 = sphi 0, %s70
    %s88 = sphi 0, %s88
    %s90 = sphi 0, %s88
    %s91 = sphi 0, %s90
    %s105 = sphi 0, %s91
    %s109 = sphi 0, %s109
    %s111 = sphi 0, %s109
    %s112 = sphi 0, %s111
    %s126 = sphi 0, %s112
    %s130 = sphi 0, %s130
    %s132 = sphi 0, %s130
    %s133 = sphi 0, %s132
    %s147 = sphi 0, %s133
    %s153 = sphi 0, %s155
    %s156 = sphi 0, %s153
    %s157 = sphi 0, %s156
    %s173 = sphi 0, %s157
  $region4: #{_mixffm_tensor.1} parent=0 // loop_header_branch
    %15 = sbr.rel (%p13) target = $region8
  $region5: #{_mixffm_tensor.1} parent=0 // loop_body
    %s17 = ssub.s32 %s12, 1
    %s18 = ssub.s32 %s12, 2
    %s19 = sadd.s32 %s12, 1
    %s20 = ssub.s32 %s12, %s19
    %p21 = scmp.eq.s32.totalorder %s20, 0
    %s23 = sadd.s32 %s22, 1
    %s24 = scalar_select %p21, %s22, %s23
    %p27 = pneg %p21
    %p28 = scmp.eq.s32.totalorder %s12, 1
    %p29 = por %p27, %p28
    %p30 = scmp.ne.s32.totalorder %s22, %s25
    %p31 = scmp.eq.s32.totalorder %s12, 0
    %p32 = por %p30, %p31
    %p33 = scmp.ne.s32.totalorder %s22, %s25
    %p34 = scmp.eq.s32.totalorder %s17, 1
    %p35 = por %p33, %p34
    %p36 = scmp.ne.s32.totalorder %s25, %s26
    %p37 = scmp.eq.s32.totalorder %s17, 0
    %p38 = por %p36, %p37
    %p39 = scmp.ne.s32.totalorder %s25, %s26
    %p40 = scmp.eq.s32.totalorder %s18, 1
    %p41 = por %p39, %p40
    %p43 = scmp.ne.s32.totalorder %s26, %s42
    %p44 = scmp.eq.s32.totalorder %s18, 0
    %p45 = por %p43, %p44
    %s47 = sadd.s32 %s46, 1
    %p50 = scmp.eq.s32.totalorder %s12, 1
    %p51 = scmp.ne.s32.totalorder %s46, %s48
    %p52 = scmp.eq.s32.totalorder %s12, 0
    %p53 = por %p51, %p52
    %p54 = scmp.ne.s32.totalorder %s46, %s48
    %p55 = scmp.eq.s32.totalorder %s17, 1
    %p56 = por %p54, %p55
    %p57 = scmp.ne.s32.totalorder %s48, %s49
    %p58 = scmp.eq.s32.totalorder %s17, 0
    %p59 = por %p57, %p58
    %p60 = scmp.ne.s32.totalorder %s48, %s49
    %p61 = scmp.eq.s32.totalorder %s18, 1
    %p62 = por %p60, %p61
    %p64 = scmp.ne.s32.totalorder %s49, %s63
    %p65 = scmp.eq.s32.totalorder %s18, 0
    %p66 = por %p64, %p65
    %s68 = sadd.s32 %s67, 1
    %p71 = scmp.eq.s32.totalorder %s12, 1
    %p72 = scmp.ne.s32.totalorder %s67, %s69
    %p73 = scmp.eq.s32.totalorder %s12, 0
    %p74 = por %p72, %p73
    %p75 = scmp.ne.s32.totalorder %s67, %s69
    %p76 = scmp.eq.s32.totalorder %s17, 1
    %p77 = por %p75, %p76
    %p78 = scmp.ne.s32.totalorder %s69, %s70
    %p79 = scmp.eq.s32.totalorder %s17, 0
    %p80 = por %p78, %p79
    %p81 = scmp.ne.s32.totalorder %s69, %s70
    %p82 = scmp.eq.s32.totalorder %s18, 1
    %p83 = por %p81, %p82
    %p85 = scmp.ne.s32.totalorder %s70, %s84
    %p86 = scmp.eq.s32.totalorder %s18, 0
    %p87 = por %p85, %p86
    %s89 = sadd.s32 %s88, 1
    %p92 = scmp.eq.s32.totalorder %s12, 1
    %p93 = scmp.ne.s32.totalorder %s88, %s90
    %p94 = scmp.eq.s32.totalorder %s12, 0
    %p95 = por %p93, %p94
    %p96 = scmp.ne.s32.totalorder %s88, %s90
    %p97 = scmp.eq.s32.totalorder %s17, 1
    %p98 = por %p96, %p97
    %p99 = scmp.ne.s32.totalorder %s90, %s91
    %p100 = scmp.eq.s32.totalorder %s17, 0
    %p101 = por %p99, %p100
    %p102 = scmp.ne.s32.totalorder %s90, %s91
    %p103 = scmp.eq.s32.totalorder %s18, 1
    %p104 = por %p102, %p103
    %p106 = scmp.ne.s32.totalorder %s91, %s105
    %p107 = scmp.eq.s32.totalorder %s18, 0
    %p108 = por %p106, %p107
    %s110 = sadd.s32 %s109, 1
    %p113 = scmp.eq.s32.totalorder %s12, 1
    %p114 = scmp.ne.s32.totalorder %s109, %s111
    %p115 = scmp.eq.s32.totalorder %s12, 0
    %p116 = por %p114, %p115
    %p117 = scmp.ne.s32.totalorder %s109, %s111
    %p118 = scmp.eq.s32.totalorder %s17, 1
    %p119 = por %p117, %p118
    %p120 = scmp.ne.s32.totalorder %s111, %s112
    %p121 = scmp.eq.s32.totalorder %s17, 0
    %p122 = por %p120, %p121
    %p123 = scmp.ne.s32.totalorder %s111, %s112
    %p124 = scmp.eq.s32.totalorder %s18, 1
    %p125 = por %p123, %p124
    %p127 = scmp.ne.s32.totalorder %s112, %s126
    %p128 = scmp.eq.s32.totalorder %s18, 0
    %p129 = por %p127, %p128
    %s131 = sadd.s32 %s130, 1
    %p134 = scmp.eq.s32.totalorder %s12, 1
    %p135 = scmp.ne.s32.totalorder %s130, %s132
    %p136 = scmp.eq.s32.totalorder %s12, 0
    %p137 = por %p135, %p136
    %p138 = scmp.ne.s32.totalorder %s130, %s132
    %p139 = scmp.eq.s32.totalorder %s17, 1
    %p140 = por %p138, %p139
    %p141 = scmp.ne.s32.totalorder %s132, %s133
    %p142 = scmp.eq.s32.totalorder %s17, 0
    %p143 = por %p141, %p142
    %p144 = scmp.ne.s32.totalorder %s132, %s133
    %p145 = scmp.eq.s32.totalorder %s18, 1
    %p146 = por %p144, %p145
    %p148 = scmp.ne.s32.totalorder %s133, %s147
    %p149 = scmp.eq.s32.totalorder %s18, 0
    %p150 = por %p148, %p149
    %s151 = ssub.s32 %s12, %s19
    %p152 = scmp.eq.s32.totalorder %s151, 0
    %s154 = sadd.s32 %s153, 1
    %s155 = scalar_select %p152, %s153, %s154
    %p158 = pneg %p152
    %p159 = scmp.eq.s32.totalorder %s12, 1
    %p160 = por %p158, %p159
    %p161 = scmp.ne.s32.totalorder %s153, %s156
    %p162 = scmp.eq.s32.totalorder %s12, 0
    %p163 = por %p161, %p162
    %p164 = scmp.ne.s32.totalorder %s153, %s156
    %p165 = scmp.eq.s32.totalorder %s17, 1
    %p166 = por %p164, %p165
    %p167 = scmp.ne.s32.totalorder %s156, %s157
    %p168 = scmp.eq.s32.totalorder %s17, 0
    %p169 = por %p167, %p168
    %p170 = scmp.ne.s32.totalorder %s156, %s157
    %p171 = scmp.eq.s32.totalorder %s18, 1
    %p172 = por %p170, %p171
    %p174 = scmp.ne.s32.totalorder %s157, %s173
    %p175 = scmp.eq.s32.totalorder %s18, 0
    %p176 = por %p174, %p175
    %p177 = scmp.le.s32.totalorder 1, %s12
    %p178 = scmp.lt.s32.totalorder %s12, 3
    %p179 = pnand %p177, %p178
    %p180 = pneg %p179
    // Predicated region
    $region9: #{_mixffm_tensor.1} parent=5 // pred_check
      _
    $region10: #{_mixffm_tensor.1} parent=5 // pred_check_branch
      %182 = sbr.rel (%p179) target = $region12
    $region11: #{_mixffm_tensor.1} parent=5 // pred_region
      %s183 = ssub.s32 %s12, 1
      // Predicated region
      $region13: #{_mixffm_tensor.1} parent=11 // pred_check
        %p184 = pneg %p59
      $region14: #{_mixffm_tensor.1} parent=11 // pred_check_branch
        %186 = sbr.rel (%p184) target = $region16
      $region15: #{_mixffm_tensor.1} parent=11 // pred_region
        _
      $region16: #{_mixffm_tensor.1} parent=11 // pred_fallthru
        _
      // Predicated region
      $region17: #{_mixffm_tensor.1} parent=11 // pred_check
        %p187 = pneg %p80
      $region18: #{_mixffm_tensor.1} parent=11 // pred_check_branch
        %189 = sbr.rel (%p187) target = $region20
      $region19: #{_mixffm_tensor.1} parent=11 // pred_region
        _
      $region20: #{_mixffm_tensor.1} parent=11 // pred_fallthru
        _
      // Predicated region
      $region21: #{_mixffm_tensor.1} parent=11 // pred_check
        %p190 = pneg %p101
      $region22: #{_mixffm_tensor.1} parent=11 // pred_check_branch
        %192 = sbr.rel (%p190) target = $region24
      $region23: #{_mixffm_tensor.1} parent=11 // pred_region
        _
      $region24: #{_mixffm_tensor.1} parent=11 // pred_fallthru
        _
      // Predicated region
      $region25: #{_mixffm_tensor.1} parent=11 // pred_check
        %p193 = pneg %p122
      $region26: #{_mixffm_tensor.1} parent=11 // pred_check_branch
        %195 = sbr.rel (%p193) target = $region28
      $region27: #{_mixffm_tensor.1} parent=11 // pred_region
        _
      $region28: #{_mixffm_tensor.1} parent=11 // pred_fallthru
        _
      // Predicated region
      $region29: #{_mixffm_tensor.1} parent=11 // pred_check
        %p196 = pneg %p143
      $region30: #{_mixffm_tensor.1} parent=11 // pred_check_branch
        %198 = sbr.rel (%p196) target = $region32
      $region31: #{_mixffm_tensor.1} parent=11 // pred_region
        _
      $region32: #{_mixffm_tensor.1} parent=11 // pred_fallthru
        _
    $region12: #{_mixffm_tensor.1} parent=5 // pred_fallthru
      _
    %p199 = scmp.lt.s32.totalorder %s12, 2
    // Predicated region
    $region33: #{_mixffm_tensor.1} parent=5 // pred_check
      %p200 = pneg %p199
    $region34: #{_mixffm_tensor.1} parent=5 // pred_check_branch
      %202 = sbr.rel (%p200) target = $region36
    $region35: #{_mixffm_tensor.1} parent=5 // pred_region
      // Predicated region
      $region37: #{_mixffm_tensor.1} parent=35 // pred_check
        %p203 = pneg %p32
      $region38: #{_mixffm_tensor.1} parent=35 // pred_check_branch
        %205 = sbr.rel (%p203) target = $region40
      $region39: #{_mixffm_tensor.1} parent=35 // pred_region
        %p206 = scmp.lt.s32.totalorder %s12, 1
        %s207 = scalar_select %p206, %s12, 1
        %s208 = smul.addr %s207, 8
        %s209 = smul.addr %s208, 8
        %s210 = scalar_lea.vmem %s0, %s209
      $region40: #{_mixffm_tensor.1} parent=35 // pred_fallthru
        _
    $region36: #{_mixffm_tensor.1} parent=5 // pred_fallthru
      _
    %p211 = scmp.le.s32.totalorder 1, %s12
    %p212 = scmp.lt.s32.totalorder %s12, 3
    %p213 = pnand %p211, %p212
    %p214 = pneg %p213
    // Predicated region
    $region41: #{_mixffm_tensor.1} parent=5 // pred_check
      _
    $region42: #{_mixffm_tensor.1} parent=5 // pred_check_branch
      %216 = sbr.rel (%p213) target = $region44
    $region43: #{_mixffm_tensor.1} parent=5 // pred_region
      %s217 = ssub.s32 %s12, 1
      %p218 = scmp.lt.s32.totalorder %s17, 1
      %s219 = scalar_select %p218, %s17, 1
      %s220 = smul.addr %s219, 8
      %s221 = smul.addr %s220, 8
      %s222 = scalar_lea.vmem %s0, %s221
      %p223 = pneg %p38
      %p224 = pneg %p35
      %p225 = pneg %p59
      %p226 = pneg %p56
      %p227 = pneg %p80
      %p228 = pneg %p77
      %p229 = pneg %p101
      %p230 = pneg %p98
      %p231 = pneg %p122
      %p232 = pneg %p119
      %p233 = pneg %p143
      %p234 = pneg %p140
      %p235 = pneg %p169
      %p236 = pneg %p166
      %p237 = scmp.lt.s32.totalorder %s17, 1
      %s238 = scalar_select %p237, %s17, 1
      %s239 = smul.addr %s238, 8
      %s240 = smul.addr %s239, 8
      %s241 = scalar_lea.vmem %s6, %s240
      %p242 = scmp.lt.s32.totalorder %s17, 1
      %s243 = scalar_select %p242, %s17, 1
      %s244 = smul.addr %s243, 8
      %s245 = smul.addr %s244, 8
      %s246 = scalar_lea.vmem %s0, %s245
      %p247 = scmp.lt.s32.totalorder %s17, 1
      %s248 = scalar_select %p247, %s17, 1
      %s249 = smul.addr %s248, 8
      %s250 = smul.addr %s249, 8
      %s251 = scalar_lea.vmem %s6, %s250
      %v252 = vld [vmem:[%s1] sm:$0x3]
      %s253 = scalar_lea.vmem %s1, 2
      %v254 = vld [vmem:[%s253] sm:$0x3]
      %s255 = scalar_lea.vmem %s1, 4
      %v256 = vld [vmem:[%s255] sm:$0x3]
      %s257 = scalar_lea.vmem %s1, 6
      %v258 = vld [vmem:[%s257] sm:$0x3]
      %s259 = scalar_lea.vmem %s1, 10
      %v260 = vld [vmem:[%s259] sm:$0x3]
      %s261 = scalar_lea.vmem %s1, 12
      %v262 = vld [vmem:[%s261] sm:$0x3]
      %s263 = scalar_lea.vmem %s1, 14
      %v264 = vld [vmem:[%s263] sm:$0x3]
      %s265 = scalar_lea.vmem %s1, 16
      %v266 = vld [vmem:[%s265] sm:$0x3]
      %v267 = vld [vmem:[%s246] sm:$0xff]
      %v268 = vld [vmem:[%s246 + $0x8] sm:$0xff]
      %s269 = scalar_lea.vmem %s246, 16
      %v270 = vld [vmem:[%s269] sm:$0xff]
      %v271 = vld [vmem:[%s269 + $0x8] sm:$0xff]
      %s272 = scalar_lea.vmem %s246, 32
      %v273 = vld [vmem:[%s272] sm:$0xff]
      %v274 = vld [vmem:[%s272 + $0x8] sm:$0xff]
      %s275 = scalar_lea.vmem %s246, 48
      %v276 = vld [vmem:[%s275] sm:$0xff]
      %v277 = vld [vmem:[%s275 + $0x8] sm:$0xff]
      %278 = vrot.lane.b32.xlu0 %v276, 17
      %v279 = vpop.permute.xlu0 %278
      %280 = vrot.lane.b32.xlu0 %v277, 17
      %v281 = vpop.permute.xlu0 %280
      %v282 = vlaneseq
      %v283 = vand.u32 %v282, 127
      %vm284 = vcmp.lt.s32.totalorder %v283, 17
      %v285 = vsel %vm284, %v279, %v281
      %v286 = vsel %vm284, %v281, %v279
      %v288 = vlaneseq
      %v289 = vshrl.u32 %v288, 7
      %v290 = vsub.s32 0, %v289
      %v291 = vrot.slane %v252, %v290
      %v292 = vlaneseq
      %v293 = vshrl.u32 %v292, 7
      %v294 = vsub.s32 1, %v293
      %v295 = vrot.slane %v252, %v294
      %v298 = vmul.f32 %v286, %v291
      %v299 = vmul.f32 %v285, %v295
      %300 = vrot.lane.b32.xlu0 %v273, 16
      %v301 = vpop.permute.xlu0 %300
      %302 = vrot.lane.b32.xlu0 %v274, 16
      %v303 = vpop.permute.xlu0 %302
      %vm304 = vcmp.lt.s32.totalorder %v283, 16
      %v305 = vsel %vm304, %v301, %v303
      %v306 = vsel %vm304, %v303, %v301
      %v308 = vlaneseq
      %v309 = vshrl.u32 %v308, 7
      %v310 = vsub.s32 0, %v309
      %v311 = vrot.slane %v254, %v310
      %v312 = vlaneseq
      %v313 = vshrl.u32 %v312, 7
      %v314 = vsub.s32 1, %v313
      %v315 = vrot.slane %v254, %v314
      %v318 = vmul.f32 %v306, %v311
      %v319 = vmul.f32 %v305, %v315
      %320 = vrot.lane.b32.xlu0 %v276, 16
      %v321 = vpop.permute.xlu0 %320
      %322 = vrot.lane.b32.xlu0 %v277, 16
      %v323 = vpop.permute.xlu0 %322
      %v324 = vsel %vm304, %v321, %v323
      %v325 = vsel %vm304, %v323, %v321
      %v326 = vmul.f32 %v325, %v311
      %v327 = vmul.f32 %v324, %v315
      %328 = vrot.lane.b32.xlu0 %v273, 15
      %v329 = vpop.permute.xlu0 %328
      %330 = vrot.lane.b32.xlu0 %v274, 15
      %v331 = vpop.permute.xlu0 %330
      %vm332 = vcmp.lt.s32.totalorder %v283, 15
      %v333 = vsel %vm332, %v329, %v331
      %v334 = vsel %vm332, %v331, %v329
      %v336 = vlaneseq
      %v337 = vshrl.u32 %v336, 7
      %v338 = vsub.s32 0, %v337
      %v339 = vrot.slane %v256, %v338
      %v340 = vlaneseq
      %v341 = vshrl.u32 %v340, 7
      %v342 = vsub.s32 1, %v341
      %v343 = vrot.slane %v256, %v342
      %v346 = vmul.f32 %v334, %v339
      %v347 = vmul.f32 %v333, %v343
      %348 = vrot.lane.b32.xlu0 %v270, 1
      %v349 = vpop.permute.xlu0 %348
      %350 = vrot.lane.b32.xlu0 %v271, 1
      %v351 = vpop.permute.xlu0 %350
      %vm352 = vcmp.lt.s32.totalorder %v283, 1
      %v353 = vsel %vm352, %v349, %v351
      %v354 = vsel %vm352, %v351, %v349
      %v356 = vlaneseq
      %v357 = vshrl.u32 %v356, 7
      %v358 = vsub.s32 0, %v357
      %v359 = vrot.slane %v258, %v358
      %v360 = vlaneseq
      %v361 = vshrl.u32 %v360, 7
      %v362 = vsub.s32 1, %v361
      %v363 = vrot.slane %v258, %v362
      %v366 = vmul.f32 %v354, %v359
      %v367 = vmul.f32 %v353, %v363
      %368 = vrot.lane.b32.xlu0 %v267, 127
      %v369 = vpop.permute.xlu0 %368
      %370 = vrot.lane.b32.xlu0 %v268, 127
      %v371 = vpop.permute.xlu0 %370
      %vm372 = vcmp.lt.s32.totalorder %v283, 127
      %v373 = vsel %vm372, %v369, %v371
      %v374 = vsel %vm372, %v371, %v369
      %v376 = vlaneseq
      %v377 = vshrl.u32 %v376, 7
      %v378 = vsub.s32 0, %v377
      %v379 = vrot.slane %v260, %v378
      %v380 = vlaneseq
      %v381 = vshrl.u32 %v380, 7
      %v382 = vsub.s32 1, %v381
      %v383 = vrot.slane %v260, %v382
      %v386 = vmul.f32 %v373, %v379
      %v387 = vmul.f32 %v374, %v383
      %388 = vrot.lane.b32.xlu0 %v276, 1
      %v389 = vpop.permute.xlu0 %388
      %390 = vrot.lane.b32.xlu0 %v277, 1
      %v391 = vpop.permute.xlu0 %390
      %v392 = vsel %vm352, %v389, %v391
      %v393 = vsel %vm352, %v391, %v389
      %v394 = vmul.f32 %v393, %v359
      %v395 = vmul.f32 %v392, %v363
      %396 = vrot.lane.b32.xlu0 %v273, 127
      %v397 = vpop.permute.xlu0 %396
      %398 = vrot.lane.b32.xlu0 %v274, 127
      %v399 = vpop.permute.xlu0 %398
      %v400 = vsel %vm372, %v397, %v399
      %v401 = vsel %vm372, %v399, %v397
      %v402 = vmul.f32 %v400, %v379
      %v403 = vmul.f32 %v401, %v383
      %404 = vrot.lane.b32.xlu0 %v270, 113
      %v405 = vpop.permute.xlu0 %404
      %406 = vrot.lane.b32.xlu0 %v271, 113
      %v407 = vpop.permute.xlu0 %406
      %vm408 = vcmp.lt.s32.totalorder %v283, 113
      %v409 = vsel %vm408, %v405, %v407
      %v410 = vsel %vm408, %v407, %v405
      %v412 = vlaneseq
      %v413 = vshrl.u32 %v412, 7
      %v414 = vsub.s32 0, %v413
      %v415 = vrot.slane %v262, %v414
      %v416 = vlaneseq
      %v417 = vshrl.u32 %v416, 7
      %v418 = vsub.s32 1, %v417
      %v419 = vrot.slane %v262, %v418
      %v422 = vmul.f32 %v409, %v415
      %v423 = vmul.f32 %v410, %v419
      %424 = vrot.lane.b32.xlu0 %v267, 112
      %v425 = vpop.permute.xlu0 %424
      %426 = vrot.lane.b32.xlu0 %v268, 112
      %v427 = vpop.permute.xlu0 %426
      %vm428 = vcmp.lt.s32.totalorder %v283, 112
      %v429 = vsel %vm428, %v425, %v427
      %v430 = vsel %vm428, %v427, %v425
      %v432 = vlaneseq
      %v433 = vshrl.u32 %v432, 7
      %v434 = vsub.s32 0, %v433
      %v435 = vrot.slane %v264, %v434
      %v436 = vlaneseq
      %v437 = vshrl.u32 %v436, 7
      %v438 = vsub.s32 1, %v437
      %v439 = vrot.slane %v264, %v438
      %v442 = vmul.f32 %v429, %v435
      %v443 = vmul.f32 %v430, %v439
      %444 = vrot.lane.b32.xlu0 %v270, 112
      %v445 = vpop.permute.xlu0 %444
      %446 = vrot.lane.b32.xlu0 %v271, 112
      %v447 = vpop.permute.xlu0 %446
      %v448 = vsel %vm428, %v445, %v447
      %v449 = vsel %vm428, %v447, %v445
      %v450 = vmul.f32 %v448, %v435
      %v451 = vmul.f32 %v449, %v439
      %452 = vrot.lane.b32.xlu0 %v267, 111
      %v453 = vpop.permute.xlu0 %452
      %454 = vrot.lane.b32.xlu0 %v268, 111
      %v455 = vpop.permute.xlu0 %454
      %vm456 = vcmp.lt.s32.totalorder %v283, 111
      %v457 = vsel %vm456, %v453, %v455
      %v458 = vsel %vm456, %v455, %v453
      %v460 = vlaneseq
      %v461 = vshrl.u32 %v460, 7
      %v462 = vsub.s32 0, %v461
      %v463 = vrot.slane %v266, %v462
      %v464 = vlaneseq
      %v465 = vshrl.u32 %v464, 7
      %v466 = vsub.s32 1, %v465
      %v467 = vrot.slane %v266, %v466
      %v470 = vmul.f32 %v457, %v463
      %v471 = vmul.f32 %v458, %v467
      %v472 = vld [vmem:[%s2] sm:$0xff]
      %473 = vmatprep.subr.mxu0 %v299
      %474 = vmatpush1.msra.mxu0 %v298
      %475 = vmatprep.subr.mxu0 %v319
      %476 = vmatpush1.msra.mxu0 %v318
      %477 = vmatprep.subr.mxu0 %v327
      %478 = vmatpush1.msra.mxu0 %v326
      %479 = vmatprep.subr.mxu0 %v347
      %480 = vmatpush1.msra.mxu0 %v346
      %481 = vmatprep.subr.mxu0 %v367
      %482 = vmatpush1.msra.mxu0 %v366
      %483 = vmatprep.subr.mxu0 %v268
      %484 = vmatpush1.msra.mxu0 %v267
      %485 = vmatprep.subr.mxu0 %v271
      %486 = vmatpush1.msra.mxu0 %v270
      %487 = vmatprep.subr.mxu0 %v387
      %488 = vmatpush1.msra.mxu0 %v386
      %489 = vmatprep.subr.mxu0 %v395
      %490 = vmatpush1.msra.mxu0 %v394
      %491 = vmatprep.subr.mxu0 %v274
      %492 = vmatpush1.msra.mxu0 %v273
      %493 = vmatprep.subr.mxu0 %v277
      %494 = vmatpush1.msra.mxu0 %v276
      %495 = vmatprep.subr.mxu0 %v403
      %496 = vmatpush1.msra.mxu0 %v402
      %497 = vmatprep.subr.mxu0 %v423
      %498 = vmatpush1.msra.mxu0 %v422
      %499 = vmatprep.subr.mxu0 %v443
      %500 = vmatpush1.msra.mxu0 %v442
      %501 = vmatprep.subr.mxu0 %v451
      %502 = vmatpush1.msra.mxu0 %v450
      %503 = vmatprep.subr.mxu0 %v471
      %504 = vmatpush1.msra.mxu0 %v470
      %505 = vmatprep.subr.mxu0 0.0
      %506 = vmatpush1.msra.mxu0 0.0
      %507 = vmatprep.subr.mxu0 0.0
      %508 = vmatpush1.msra.mxu0 0.0
      %509 = vmatprep.subr.mxu0 0.0
      %510 = vmatpush1.msra.mxu0 0.0
      %511 = vmatprep.subr.mxu0 0.0
      %512 = vmatpush1.msra.mxu0 0.0
      %513 = vmatprep.subr.mxu0 0.0
      %514 = vmatpush1.msra.mxu0 0.0
      %515 = vmatprep.subr.mxu0 0.0
      %516 = vmatpush1.msra.mxu0 0.0
      %517 = vmatprep.subr.mxu0 0.0
      %518 = vmatpush1.msra.mxu0 0.0
      %519 = vmatprep.subr.mxu0 0.0
      %520 = vmatpush1.msra.mxu0 0.0
      %521 = vmatprep.subr.mxu0 0.0
      %522 = vmatpush1.msra.mxu0 0.0
      %523 = vmatprep.subr.mxu0 0.0
      %524 = vmatpush1.msra.mxu0 0.0
      %525 = vmatprep.subr.mxu0 0.0
      %526 = vmatpush1.msra.mxu0 0.0
      %527 = vmatprep.subr.mxu0 0.0
      %528 = vmatpush1.msra.mxu0 0.0
      %529 = vmatprep.subr.mxu0 0.0
      %530 = vmatpush1.msra.mxu0 0.0
      %531 = vmatprep.subr.mxu0 0.0
      %532 = vmatpush1.msra.mxu0 0.0
      %533 = vmatprep.subr.mxu0 0.0
      %534 = vmatpush1.msra.mxu0 0.0
      %535 = vmatprep.subr.mxu0 0.0
      %536 = vmatpush1.msra.mxu0 0.0
      %537 = vmatprep.mubr.f32.mxu0 0.0
      %538 = vmatmul.mubr.f32.gmra.mrb[0].mxu0 %v472
      %v539 = vpop.f32.mrb[0].mxu0
      %v540 = vadd.f32 0.0, %v539
      %v541 = vpop.f32.mrb[0].mxu0
      %v542 = vadd.f32 0.0, %v541
      %543 = vdwg.mxu0
      %v544 = vadd.f32 %v540, %v542
      %545 = vadd.xlane.f32.xlu0 %v544
      %v546 = vpop.xlane.xlu0 %545
      %v547 = vmul.f32 %v546, 0.00390625
      %v548 = vsub.f32 %v540, %v547
      %v549 = vsub.f32 %v542, %v547
      %v550 = vmul.f32 %v548, %v548
      %v551 = vmul.f32 %v549, %v549
      %v552 = vadd.f32 %v550, %v551
      %553 = vadd.xlane.f32.xlu0 %v552
      %v554 = vpop.xlane.xlu0 %553
      %v555 = vmul.f32 %v554, 0.00390625
      %v556 = vadd.f32 %v555, 1e-05
      %v557 = vrsqrt.pop %v556
      %v558 = vmul.f32 %v548, %v557
      %v559 = vmul.f32 %v549, %v557
      %v560 = vmax.f32 %v558, 0.0
      %v561 = vmax.f32 %v559, 0.0
      %562 = vrot.lane.b32.xlu0 %v560, 17
      %v563 = vpop.permute.xlu0 %562
      %564 = vrot.lane.b32.xlu0 %v561, 17
      %v565 = vpop.permute.xlu0 %564
      %v566 = vsel %vm284, %v563, %v565
      %v567 = vsel %vm284, %v565, %v563
      %v568 = vmul.f32 %v567, %v291
      %v569 = vmul.f32 %v566, %v295
      %570 = vrot.lane.b32.xlu0 %v560, 16
      %v571 = vpop.permute.xlu0 %570
      %572 = vrot.lane.b32.xlu0 %v561, 16
      %v573 = vpop.permute.xlu0 %572
      %v574 = vsel %vm304, %v571, %v573
      %v575 = vsel %vm304, %v573, %v571
      %v576 = vmul.f32 %v575, %v311
      %v577 = vmul.f32 %v574, %v315
      %578 = vrot.lane.b32.xlu0 %v560, 15
      %v579 = vpop.permute.xlu0 %578
      %580 = vrot.lane.b32.xlu0 %v561, 15
      %v581 = vpop.permute.xlu0 %580
      %v582 = vsel %vm332, %v579, %v581
      %v583 = vsel %vm332, %v581, %v579
      %v584 = vmul.f32 %v583, %v339
      %v585 = vmul.f32 %v582, %v343
      %586 = vrot.lane.b32.xlu0 %v560, 1
      %v587 = vpop.permute.xlu0 %586
      %588 = vrot.lane.b32.xlu0 %v561, 1
      %v589 = vpop.permute.xlu0 %588
      %v590 = vsel %vm352, %v587, %v589
      %v591 = vsel %vm352, %v589, %v587
      %v592 = vmul.f32 %v591, %v359
      %v593 = vmul.f32 %v590, %v363
      %594 = vrot.lane.b32.xlu0 %v560, 127
      %v595 = vpop.permute.xlu0 %594
      %596 = vrot.lane.b32.xlu0 %v561, 127
      %v597 = vpop.permute.xlu0 %596
      %v598 = vsel %vm372, %v595, %v597
      %v599 = vsel %vm372, %v597, %v595
      %v600 = vmul.f32 %v598, %v379
      %v601 = vmul.f32 %v599, %v383
      %602 = vrot.lane.b32.xlu0 %v560, 113
      %v603 = vpop.permute.xlu0 %602
      %604 = vrot.lane.b32.xlu0 %v561, 113
      %v605 = vpop.permute.xlu0 %604
      %v606 = vsel %vm408, %v603, %v605
      %v607 = vsel %vm408, %v605, %v603
      %v608 = vmul.f32 %v606, %v415
      %v609 = vmul.f32 %v607, %v419
      %610 = vrot.lane.b32.xlu0 %v560, 112
      %v611 = vpop.permute.xlu0 %610
      %612 = vrot.lane.b32.xlu0 %v561, 112
      %v613 = vpop.permute.xlu0 %612
      %v614 = vsel %vm428, %v611, %v613
      %v615 = vsel %vm428, %v613, %v611
      %v616 = vmul.f32 %v614, %v435
      %v617 = vmul.f32 %v615, %v439
      %618 = vrot.lane.b32.xlu0 %v560, 111
      %v619 = vpop.permute.xlu0 %618
      %620 = vrot.lane.b32.xlu0 %v561, 111
      %v621 = vpop.permute.xlu0 %620
      %v622 = vsel %vm456, %v619, %v621
      %v623 = vsel %vm456, %v621, %v619
      %v624 = vmul.f32 %v622, %v463
      %v625 = vmul.f32 %v623, %v467
      %v626 = vld [vmem:[%s3] sm:$0xff]
      %vm627 = vcmask 588800
      %v629 = vsel %vm627, %v626, 0
      %631 = vmatprep.subr.mxu0 %v569
      %632 = vmatpush1.msra.mxu0 %v568
      %633 = vmatprep.subr.mxu0 %v577
      %634 = vmatpush1.msra.mxu0 %v576
      %635 = vmatprep.subr.mxu0 %v585
      %636 = vmatpush1.msra.mxu0 %v584
      %637 = vmatprep.subr.mxu0 %v593
      %638 = vmatpush1.msra.mxu0 %v592
      %639 = vmatprep.subr.mxu0 %v561
      %640 = vmatpush1.msra.mxu0 %v560
      %641 = vmatprep.subr.mxu0 %v601
      %642 = vmatpush1.msra.mxu0 %v600
      %643 = vmatprep.subr.mxu0 %v609
      %644 = vmatpush1.msra.mxu0 %v608
      %645 = vmatprep.subr.mxu0 %v617
      %646 = vmatpush1.msra.mxu0 %v616
      %647 = vmatprep.subr.mxu0 %v625
      %648 = vmatpush1.msra.mxu0 %v624
      %649 = vmatprep.subr.mxu0 0.0
      %650 = vmatpush1.msra.mxu0 0.0
      %651 = vmatprep.subr.mxu0 0.0
      %652 = vmatpush1.msra.mxu0 0.0
      %653 = vmatprep.subr.mxu0 0.0
      %654 = vmatpush1.msra.mxu0 0.0
      %655 = vmatprep.subr.mxu0 0.0
      %656 = vmatpush1.msra.mxu0 0.0
      %657 = vmatprep.subr.mxu0 0.0
      %658 = vmatpush1.msra.mxu0 0.0
      %659 = vmatprep.subr.mxu0 0.0
      %660 = vmatpush1.msra.mxu0 0.0
      %661 = vmatprep.subr.mxu0 0.0
      %662 = vmatpush1.msra.mxu0 0.0
      %663 = vmatprep.subr.mxu0 0.0
      %664 = vmatpush1.msra.mxu0 0.0
      %665 = vmatprep.subr.mxu0 0.0
      %666 = vmatpush1.msra.mxu0 0.0
      %667 = vmatprep.subr.mxu0 0.0
      %668 = vmatpush1.msra.mxu0 0.0
      %669 = vmatprep.subr.mxu0 0.0
      %670 = vmatpush1.msra.mxu0 0.0
      %671 = vmatprep.subr.mxu0 0.0
      %672 = vmatpush1.msra.mxu0 0.0
      %673 = vmatprep.subr.mxu0 0.0
      %674 = vmatpush1.msra.mxu0 0.0
      %675 = vmatprep.subr.mxu0 0.0
      %676 = vmatpush1.msra.mxu0 0.0
      %677 = vmatprep.subr.mxu0 0.0
      %678 = vmatpush1.msra.mxu0 0.0
      %679 = vmatprep.subr.mxu0 0.0
      %680 = vmatpush1.msra.mxu0 0.0
      %681 = vmatprep.subr.mxu0 0.0
      %682 = vmatpush1.msra.mxu0 0.0
      %683 = vmatprep.subr.mxu0 0.0
      %684 = vmatpush1.msra.mxu0 0.0
      %685 = vmatprep.subr.mxu0 0.0
      %686 = vmatpush1.msra.mxu0 0.0
      %687 = vmatprep.subr.mxu0 0.0
      %688 = vmatpush1.msra.mxu0 0.0
      %689 = vmatprep.subr.mxu0 0.0
      %690 = vmatpush1.msra.mxu0 0.0
      %691 = vmatprep.subr.mxu0 0.0
      %692 = vmatpush1.msra.mxu0 0.0
      %693 = vmatprep.subr.mxu0 0.0
      %694 = vmatpush1.msra.mxu0 0.0
      %695 = vmatprep.mubr.f32.mxu0 0.0
      %696 = vmatmul.mubr.f32.gmra.mrb[0].mxu0 %v629
      %v697 = vpop.f32.mrb[0].mxu0
      %v698 = vadd.f32 0.0, %v697
      %v699 = vpop.f32.mrb[0].mxu0
      %v700 = vadd.f32 0.0, %v699
      %701 = vdwg.mxu0
      %v702 = vadd.f32 %v698, %v700
      %703 = vadd.xlane.f32.xlu0 %v702
      %v704 = vpop.xlane.xlu0 %703
      %v705 = vmul.f32 %v704, 0.00390625
      %v706 = vsub.f32 %v698, %v705
      %v707 = vsub.f32 %v700, %v705
      %v708 = vmul.f32 %v706, %v706
      %v709 = vmul.f32 %v707, %v707
      %v710 = vadd.f32 %v708, %v709
      %711 = vadd.xlane.f32.xlu0 %v710
      %v712 = vpop.xlane.xlu0 %711
      %v713 = vmul.f32 %v712, 0.00390625
      %v714 = vadd.f32 %v713, 1e-05
      %v715 = vrsqrt.pop %v714
      %v716 = vmul.f32 %v706, %v715
      %v717 = vmul.f32 %v707, %v715
      %v718 = vmax.f32 %v716, 0.0
      %v719 = vmax.f32 %v717, 0.0
      %720 = vrot.lane.b32.xlu0 %v718, 17
      %v721 = vpop.permute.xlu0 %720
      %722 = vrot.lane.b32.xlu0 %v719, 17
      %v723 = vpop.permute.xlu0 %722
      %v724 = vsel %vm284, %v721, %v723
      %v725 = vsel %vm284, %v723, %v721
      %v726 = vmul.f32 %v725, %v291
      %v727 = vmul.f32 %v724, %v295
      %728 = vrot.lane.b32.xlu0 %v718, 16
      %v729 = vpop.permute.xlu0 %728
      %730 = vrot.lane.b32.xlu0 %v719, 16
      %v731 = vpop.permute.xlu0 %730
      %v732 = vsel %vm304, %v729, %v731
      %v733 = vsel %vm304, %v731, %v729
      %v734 = vmul.f32 %v733, %v311
      %v735 = vmul.f32 %v732, %v315
      %736 = vrot.lane.b32.xlu0 %v718, 15
      %v737 = vpop.permute.xlu0 %736
      %738 = vrot.lane.b32.xlu0 %v719, 15
      %v739 = vpop.permute.xlu0 %738
      %v740 = vsel %vm332, %v737, %v739
      %v741 = vsel %vm332, %v739, %v737
      %v742 = vmul.f32 %v741, %v339
      %v743 = vmul.f32 %v740, %v343
      %744 = vrot.lane.b32.xlu0 %v718, 1
      %v745 = vpop.permute.xlu0 %744
      %746 = vrot.lane.b32.xlu0 %v719, 1
      %v747 = vpop.permute.xlu0 %746
      %v748 = vsel %vm352, %v745, %v747
      %v749 = vsel %vm352, %v747, %v745
      %v750 = vmul.f32 %v749, %v359
      %v751 = vmul.f32 %v748, %v363
      %752 = vrot.lane.b32.xlu0 %v718, 127
      %v753 = vpop.permute.xlu0 %752
      %754 = vrot.lane.b32.xlu0 %v719, 127
      %v755 = vpop.permute.xlu0 %754
      %v756 = vsel %vm372, %v753, %v755
      %v757 = vsel %vm372, %v755, %v753
      %v758 = vmul.f32 %v756, %v379
      %v759 = vmul.f32 %v757, %v383
      %760 = vrot.lane.b32.xlu0 %v718, 113
      %v761 = vpop.permute.xlu0 %760
      %762 = vrot.lane.b32.xlu0 %v719, 113
      %v763 = vpop.permute.xlu0 %762
      %v764 = vsel %vm408, %v761, %v763
      %v765 = vsel %vm408, %v763, %v761
      %v766 = vmul.f32 %v764, %v415
      %v767 = vmul.f32 %v765, %v419
      %768 = vrot.lane.b32.xlu0 %v718, 112
      %v769 = vpop.permute.xlu0 %768
      %770 = vrot.lane.b32.xlu0 %v719, 112
      %v771 = vpop.permute.xlu0 %770
      %v772 = vsel %vm428, %v769, %v771
      %v773 = vsel %vm428, %v771, %v769
      %v774 = vmul.f32 %v772, %v435
      %v775 = vmul.f32 %v773, %v439
      %776 = vrot.lane.b32.xlu0 %v718, 111
      %v777 = vpop.permute.xlu0 %776
      %778 = vrot.lane.b32.xlu0 %v719, 111
      %v779 = vpop.permute.xlu0 %778
      %v780 = vsel %vm456, %v777, %v779
      %v781 = vsel %vm456, %v779, %v777
      %v782 = vmul.f32 %v780, %v463
      %v783 = vmul.f32 %v781, %v467
      %v784 = vld [vmem:[%s4] sm:$0xff]
      %v785 = vld [vmem:[%s4 + $0x8] sm:$0xff]
      %v786 = vld [vmem:[%s4 + $0x10] sm:$0xff]
      %v787 = vld [vmem:[%s4 + $0x18] sm:$0xff]
      %v789 = vsel %vm627, %v784, 0
      %v792 = vsel %vm627, %v785, 0
      %v795 = vsel %vm627, %v786, 0
      %v798 = vsel %vm627, %v787, 0
      %800 = vmatprep.subr.mxu0 %v727
      %801 = vmatpush1.msra.mxu0 %v726
      %802 = vmatprep.subr.mxu0 %v735
      %803 = vmatpush1.msra.mxu0 %v734
      %804 = vmatprep.subr.mxu0 %v743
      %805 = vmatpush1.msra.mxu0 %v742
      %806 = vmatprep.subr.mxu0 %v751
      %807 = vmatpush1.msra.mxu0 %v750
      %808 = vmatprep.subr.mxu0 %v719
      %809 = vmatpush1.msra.mxu0 %v718
      %810 = vmatprep.subr.mxu0 %v759
      %811 = vmatpush1.msra.mxu0 %v758
      %812 = vmatprep.subr.mxu0 %v767
      %813 = vmatpush1.msra.mxu0 %v766
      %814 = vmatprep.subr.mxu0 %v775
      %815 = vmatpush1.msra.mxu0 %v774
      %816 = vmatprep.subr.mxu0 %v783
      %817 = vmatpush1.msra.mxu0 %v782
      %818 = vmatprep.subr.mxu0 0.0
      %819 = vmatpush1.msra.mxu0 0.0
      %820 = vmatprep.subr.mxu0 0.0
      %821 = vmatpush1.msra.mxu0 0.0
      %822 = vmatprep.subr.mxu0 0.0
      %823 = vmatpush1.msra.mxu0 0.0
      %824 = vmatprep.subr.mxu0 0.0
      %825 = vmatpush1.msra.mxu0 0.0
      %826 = vmatprep.subr.mxu0 0.0
      %827 = vmatpush1.msra.mxu0 0.0
      %828 = vmatprep.subr.mxu0 0.0
      %829 = vmatpush1.msra.mxu0 0.0
      %830 = vmatprep.subr.mxu0 0.0
      %831 = vmatpush1.msra.mxu0 0.0
      %832 = vmatprep.subr.mxu0 0.0
      %833 = vmatpush1.msra.mxu0 0.0
      %834 = vmatprep.subr.mxu0 0.0
      %835 = vmatpush1.msra.mxu0 0.0
      %836 = vmatprep.subr.mxu0 0.0
      %837 = vmatpush1.msra.mxu0 0.0
      %838 = vmatprep.subr.mxu0 0.0
      %839 = vmatpush1.msra.mxu0 0.0
      %840 = vmatprep.subr.mxu0 0.0
      %841 = vmatpush1.msra.mxu0 0.0
      %842 = vmatprep.subr.mxu0 0.0
      %843 = vmatpush1.msra.mxu0 0.0
      %844 = vmatprep.subr.mxu0 0.0
      %845 = vmatpush1.msra.mxu0 0.0
      %846 = vmatprep.subr.mxu0 0.0
      %847 = vmatpush1.msra.mxu0 0.0
      %848 = vmatprep.subr.mxu0 0.0
      %849 = vmatpush1.msra.mxu0 0.0
      %850 = vmatprep.subr.mxu0 0.0
      %851 = vmatpush1.msra.mxu0 0.0
      %852 = vmatprep.subr.mxu0 0.0
      %853 = vmatpush1.msra.mxu0 0.0
      %854 = vmatprep.subr.mxu0 0.0
      %855 = vmatpush1.msra.mxu0 0.0
      %856 = vmatprep.subr.mxu0 0.0
      %857 = vmatpush1.msra.mxu0 0.0
      %858 = vmatprep.subr.mxu0 0.0
      %859 = vmatpush1.msra.mxu0 0.0
      %860 = vmatprep.subr.mxu0 0.0
      %861 = vmatpush1.msra.mxu0 0.0
      %862 = vmatprep.subr.mxu0 0.0
      %863 = vmatpush1.msra.mxu0 0.0
      %864 = vmatprep.mubr.f32.mxu0 0.0
      %865 = vmatmul.mubr.f32.gmra.mrb[0].mxu0 %v789
      %v866 = vpop.f32.mrb[0].mxu0
      %v867 = vadd.f32 0.0, %v866
      %v868 = vpop.f32.mrb[0].mxu0
      %v869 = vadd.f32 0.0, %v868
      %870 = vmatprep.mubr.f32.mxu0 0.0
      %871 = vmatmul.mubr.f32.gmra.mrb[0].mxu0 %v792
      %v872 = vpop.f32.mrb[0].mxu0
      %v873 = vadd.f32 0.0, %v872
      %v874 = vpop.f32.mrb[0].mxu0
      %v875 = vadd.f32 0.0, %v874
      %876 = vmatprep.mubr.f32.mxu0 0.0
      %877 = vmatmul.mubr.f32.gmra.mrb[0].mxu0 %v795
      %v878 = vpop.f32.mrb[0].mxu0
      %v879 = vadd.f32 0.0, %v878
      %v880 = vpop.f32.mrb[0].mxu0
      %v881 = vadd.f32 0.0, %v880
      %882 = vmatprep.mubr.f32.mxu0 0.0
      %883 = vmatmul.mubr.f32.gmra.mrb[0].mxu0 %v798
      %v884 = vpop.f32.mrb[0].mxu0
      %v885 = vadd.f32 0.0, %v884
      %v886 = vpop.f32.mrb[0].mxu0
      %v887 = vadd.f32 0.0, %v886
      %888 = vdwg.mxu0
      %v889 = vadd.f32 %v867, %v869
      %890 = vadd.xlane.f32.xlu0 %v889
      %v891 = vpop.xlane.xlu0 %890
      %v892 = vadd.f32 %v873, %v875
      %893 = vadd.xlane.f32.xlu0 %v892
      %v894 = vpop.xlane.xlu0 %893
      %v895 = vadd.f32 %v879, %v881
      %896 = vadd.xlane.f32.xlu0 %v895
      %v897 = vpop.xlane.xlu0 %896
      %v898 = vadd.f32 %v885, %v887
      %899 = vadd.xlane.f32.xlu0 %v898
      %v900 = vpop.xlane.xlu0 %899
      %v901 = vadd.f32 %v891, %v894
      %v902 = vadd.f32 %v901, %v897
      %v903 = vadd.f32 %v902, %v900
      %v904 = vrcp.pop 1024.0
      %v905 = vmul.f32 %v903, %v904
      %v906 = vsub.f32 %v867, %v905
      %v907 = vsub.f32 %v869, %v905
      %v908 = vsub.f32 %v873, %v905
      %v909 = vsub.f32 %v875, %v905
      %v910 = vsub.f32 %v879, %v905
      %v911 = vsub.f32 %v881, %v905
      %v912 = vsub.f32 %v885, %v905
      %v913 = vsub.f32 %v887, %v905
      %v914 = vmul.f32 %v906, %v906
      %v915 = vmul.f32 %v907, %v907
      %v916 = vmul.f32 %v908, %v908
      %v917 = vmul.f32 %v909, %v909
      %v918 = vmul.f32 %v910, %v910
      %v919 = vmul.f32 %v911, %v911
      %v920 = vmul.f32 %v912, %v912
      %v921 = vmul.f32 %v913, %v913
      %v922 = vadd.f32 %v914, %v915
      %923 = vadd.xlane.f32.xlu0 %v922
      %v924 = vpop.xlane.xlu0 %923
      %v925 = vadd.f32 %v916, %v917
      %926 = vadd.xlane.f32.xlu0 %v925
      %v927 = vpop.xlane.xlu0 %926
      %v928 = vadd.f32 %v918, %v919
      %929 = vadd.xlane.f32.xlu0 %v928
      %v930 = vpop.xlane.xlu0 %929
      %v931 = vadd.f32 %v920, %v921
      %932 = vadd.xlane.f32.xlu0 %v931
      %v933 = vpop.xlane.xlu0 %932
      %v934 = vadd.f32 %v924, %v927
      %v935 = vadd.f32 %v934, %v930
      %v936 = vadd.f32 %v935, %v933
      %v937 = vmul.f32 %v936, %v904
      %v938 = vadd.f32 %v937, 1e-05
      %v939 = vrsqrt.pop %v938
      %v940 = vmul.f32 %v906, %v939
      %v941 = vmul.f32 %v907, %v939
      %v942 = vmul.f32 %v908, %v939
      %v943 = vmul.f32 %v909, %v939
      %v944 = vmul.f32 %v910, %v939
      %v945 = vmul.f32 %v911, %v939
      %v946 = vmul.f32 %v912, %v939
      %v947 = vmul.f32 %v913, %v939
      %v948 = vmax.f32 %v940, 0.0
      %v949 = vmax.f32 %v941, 0.0
      %v950 = vmax.f32 %v942, 0.0
      %v951 = vmax.f32 %v943, 0.0
      %v952 = vmax.f32 %v944, 0.0
      %v953 = vmax.f32 %v945, 0.0
      %v954 = vmax.f32 %v946, 0.0
      %v955 = vmax.f32 %v947, 0.0
      %956 = vrot.lane.b32.xlu0 %v954, 17
      %v957 = vpop.permute.xlu0 %956
      %958 = vrot.lane.b32.xlu0 %v955, 17
      %v959 = vpop.permute.xlu0 %958
      %v960 = vsel %vm284, %v957, %v959
      %v961 = vsel %vm284, %v959, %v957
      %v962 = vmul.f32 %v961, %v291
      %v963 = vmul.f32 %v960, %v295
      %964 = vrot.lane.b32.xlu0 %v952, 16
      %v965 = vpop.permute.xlu0 %964
      %966 = vrot.lane.b32.xlu0 %v953, 16
      %v967 = vpop.permute.xlu0 %966
      %v968 = vsel %vm304, %v965, %v967
      %v969 = vsel %vm304, %v967, %v965
      %v970 = vmul.f32 %v969, %v311
      %v971 = vmul.f32 %v968, %v315
      %972 = vrot.lane.b32.xlu0 %v954, 16
      %v973 = vpop.permute.xlu0 %972
      %974 = vrot.lane.b32.xlu0 %v955, 16
      %v975 = vpop.permute.xlu0 %974
      %v976 = vsel %vm304, %v973, %v975
      %v977 = vsel %vm304, %v975, %v973
      %v978 = vmul.f32 %v977, %v311
      %v979 = vmul.f32 %v976, %v315
      %980 = vrot.lane.b32.xlu0 %v950, 1
      %v981 = vpop.permute.xlu0 %980
      %982 = vrot.lane.b32.xlu0 %v951, 1
      %v983 = vpop.permute.xlu0 %982
      %v984 = vsel %vm352, %v981, %v983
      %v985 = vsel %vm352, %v983, %v981
      %v986 = vmul.f32 %v985, %v359
      %v987 = vmul.f32 %v984, %v363
      %988 = vrot.lane.b32.xlu0 %v954, 1
      %v989 = vpop.permute.xlu0 %988
      %990 = vrot.lane.b32.xlu0 %v955, 1
      %v991 = vpop.permute.xlu0 %990
      %v992 = vsel %vm352, %v989, %v991
      %v993 = vsel %vm352, %v991, %v989
      %v994 = vmul.f32 %v993, %v359
      %v995 = vmul.f32 %v992, %v363
      %v996 = vld [vmem:[%s5] sm:$0xff]
      %v998 = vsel %vm627, %v996, 0
      %1000 = vmatprep.subr.mxu0 %v963
      %1001 = vmatpush1.msra.mxu0 %v962
      %1002 = vmatprep.subr.mxu0 %v971
      %1003 = vmatpush1.msra.mxu0 %v970
      %1004 = vmatprep.subr.mxu0 %v979
      %1005 = vmatpush1.msra.mxu0 %v978
      %1006 = vmatprep.subr.mxu0 %v987
      %1007 = vmatpush1.msra.mxu0 %v986
      %1008 = vmatprep.subr.mxu0 %v949
      %1009 = vmatpush1.msra.mxu0 %v948
      %1010 = vmatprep.subr.mxu0 %v951
      %1011 = vmatpush1.msra.mxu0 %v950
      %1012 = vmatprep.subr.mxu0 %v995
      %1013 = vmatpush1.msra.mxu0 %v994
      %1014 = vmatprep.subr.mxu0 %v953
      %1015 = vmatpush1.msra.mxu0 %v952
      %1016 = vmatprep.subr.mxu0 %v955
      %1017 = vmatpush1.msra.mxu0 %v954
      %1018 = vmatprep.subr.mxu0 0.0
      %1019 = vmatpush1.msra.mxu0 0.0
      %1020 = vmatprep.subr.mxu0 0.0
      %1021 = vmatpush1.msra.mxu0 0.0
      %1022 = vmatprep.subr.mxu0 0.0
      %1023 = vmatpush1.msra.mxu0 0.0
      %1024 = vmatprep.subr.mxu0 0.0
      %1025 = vmatpush1.msra.mxu0 0.0
      %1026 = vmatprep.subr.mxu0 0.0
      %1027 = vmatpush1.msra.mxu0 0.0
      %1028 = vmatprep.subr.mxu0 0.0
      %1029 = vmatpush1.msra.mxu0 0.0
      %1030 = vmatprep.subr.mxu0 0.0
      %1031 = vmatpush1.msra.mxu0 0.0
      %1032 = vmatprep.subr.mxu0 0.0
      %1033 = vmatpush1.msra.mxu0 0.0
      %1034 = vmatprep.subr.mxu0 0.0
      %1035 = vmatpush1.msra.mxu0 0.0
      %1036 = vmatprep.subr.mxu0 0.0
      %1037 = vmatpush1.msra.mxu0 0.0
      %1038 = vmatprep.subr.mxu0 0.0
      %1039 = vmatpush1.msra.mxu0 0.0
      %1040 = vmatprep.subr.mxu0 0.0
      %1041 = vmatpush1.msra.mxu0 0.0
      %1042 = vmatprep.subr.mxu0 0.0
      %1043 = vmatpush1.msra.mxu0 0.0
      %1044 = vmatprep.subr.mxu0 0.0
      %1045 = vmatpush1.msra.mxu0 0.0
      %1046 = vmatprep.subr.mxu0 0.0
      %1047 = vmatpush1.msra.mxu0 0.0
      %1048 = vmatprep.subr.mxu0 0.0
      %1049 = vmatpush1.msra.mxu0 0.0
      %1050 = vmatprep.subr.mxu0 0.0
      %1051 = vmatpush1.msra.mxu0 0.0
      %1052 = vmatprep.subr.mxu0 0.0
      %1053 = vmatpush1.msra.mxu0 0.0
      %1054 = vmatprep.subr.mxu0 0.0
      %1055 = vmatpush1.msra.mxu0 0.0
      %1056 = vmatprep.subr.mxu0 0.0
      %1057 = vmatpush1.msra.mxu0 0.0
      %1058 = vmatprep.subr.mxu0 0.0
      %1059 = vmatpush1.msra.mxu0 0.0
      %1060 = vmatprep.subr.mxu0 0.0
      %1061 = vmatpush1.msra.mxu0 0.0
      %1062 = vmatprep.subr.mxu0 0.0
      %1063 = vmatpush1.msra.mxu0 0.0
      %1064 = vmatprep.mubr.f32.mxu0 0.0
      %1065 = vmatmul.mubr.f32.gmra.mrb[0].mxu0 %v998
      %v1066 = vpop.f32.mrb[0].mxu0
      %v1067 = vadd.f32 0.0, %v1066
      %v1068 = vpop.f32.mrb[0].mxu0
      %v1069 = vadd.f32 0.0, %v1068
      %1070 = vdwg.mxu0
      %1071 = vrot.lane.b32.xlu0 %v952, 15
      %v1072 = vpop.permute.xlu0 %1071
      %1073 = vrot.lane.b32.xlu0 %v953, 15
      %v1074 = vpop.permute.xlu0 %1073
      %v1075 = vsel %vm332, %v1072, %v1074
      %v1076 = vsel %vm332, %v1074, %v1072
      %v1077 = vmul.f32 %v1076, %v339
      %v1078 = vmul.f32 %v1075, %v343
      %1079 = vrot.lane.b32.xlu0 %v948, 127
      %v1080 = vpop.permute.xlu0 %1079
      %1081 = vrot.lane.b32.xlu0 %v949, 127
      %v1082 = vpop.permute.xlu0 %1081
      %v1083 = vsel %vm372, %v1080, %v1082
      %v1084 = vsel %vm372, %v1082, %v1080
      %v1085 = vmul.f32 %v1083, %v379
      %v1086 = vmul.f32 %v1084, %v383
      %1087 = vrot.lane.b32.xlu0 %v952, 127
      %v1088 = vpop.permute.xlu0 %1087
      %1089 = vrot.lane.b32.xlu0 %v953, 127
      %v1090 = vpop.permute.xlu0 %1089
      %v1091 = vsel %vm372, %v1088, %v1090
      %v1092 = vsel %vm372, %v1090, %v1088
      %v1093 = vmul.f32 %v1091, %v379
      %v1094 = vmul.f32 %v1092, %v383
      %1095 = vmatprep.subr.mxu0 %v971
      %1096 = vmatpush1.msra.mxu0 %v970
      %1097 = vmatprep.subr.mxu0 %v979
      %1098 = vmatpush1.msra.mxu0 %v978
      %1099 = vmatprep.subr.mxu0 %v1078
      %1100 = vmatpush1.msra.mxu0 %v1077
      %1101 = vmatprep.subr.mxu0 %v949
      %1102 = vmatpush1.msra.mxu0 %v948
      %1103 = vmatprep.subr.mxu0 %v951
      %1104 = vmatpush1.msra.mxu0 %v950
      %1105 = vmatprep.subr.mxu0 %v1086
      %1106 = vmatpush1.msra.mxu0 %v1085
      %1107 = vmatprep.subr.mxu0 %v953
      %1108 = vmatpush1.msra.mxu0 %v952
      %1109 = vmatprep.subr.mxu0 %v955
      %1110 = vmatpush1.msra.mxu0 %v954
      %1111 = vmatprep.subr.mxu0 %v1094
      %1112 = vmatpush1.msra.mxu0 %v1093
      %1113 = vmatprep.subr.mxu0 0.0
      %1114 = vmatpush1.msra.mxu0 0.0
      %1115 = vmatprep.subr.mxu0 0.0
      %1116 = vmatpush1.msra.mxu0 0.0
      %1117 = vmatprep.subr.mxu0 0.0
      %1118 = vmatpush1.msra.mxu0 0.0
      %1119 = vmatprep.subr.mxu0 0.0
      %1120 = vmatpush1.msra.mxu0 0.0
      %1121 = vmatprep.subr.mxu0 0.0
      %1122 = vmatpush1.msra.mxu0 0.0
      %1123 = vmatprep.subr.mxu0 0.0
      %1124 = vmatpush1.msra.mxu0 0.0
      %1125 = vmatprep.subr.mxu0 0.0
      %1126 = vmatpush1.msra.mxu0 0.0
      %1127 = vmatprep.subr.mxu0 0.0
      %1128 = vmatpush1.msra.mxu0 0.0
      %1129 = vmatprep.subr.mxu0 0.0
      %1130 = vmatpush1.msra.mxu0 0.0
      %1131 = vmatprep.subr.mxu0 0.0
      %1132 = vmatpush1.msra.mxu0 0.0
      %1133 = vmatprep.subr.mxu0 0.0
      %1134 = vmatpush1.msra.mxu0 0.0
      %1135 = vmatprep.subr.mxu0 0.0
      %1136 = vmatpush1.msra.mxu0 0.0
      %1137 = vmatprep.subr.mxu0 0.0
      %1138 = vmatpush1.msra.mxu0 0.0
      %1139 = vmatprep.subr.mxu0 0.0
      %1140 = vmatpush1.msra.mxu0 0.0
      %1141 = vmatprep.subr.mxu0 0.0
      %1142 = vmatpush1.msra.mxu0 0.0
      %1143 = vmatprep.subr.mxu0 0.0
      %1144 = vmatpush1.msra.mxu0 0.0
      %1145 = vmatprep.subr.mxu0 0.0
      %1146 = vmatpush1.msra.mxu0 0.0
      %1147 = vmatprep.subr.mxu0 0.0
      %1148 = vmatpush1.msra.mxu0 0.0
      %1149 = vmatprep.subr.mxu0 0.0
      %1150 = vmatpush1.msra.mxu0 0.0
      %1151 = vmatprep.subr.mxu0 0.0
      %1152 = vmatpush1.msra.mxu0 0.0
      %1153 = vmatprep.subr.mxu0 0.0
      %1154 = vmatpush1.msra.mxu0 0.0
      %1155 = vmatprep.subr.mxu0 0.0
      %1156 = vmatpush1.msra.mxu0 0.0
      %1157 = vmatprep.subr.mxu0 0.0
      %1158 = vmatpush1.msra.mxu0 0.0
      %1159 = vmatprep.mubr.f32.mxu0 0.0
      %1160 = vmatmul.mubr.f32.gmra.mrb[0].mxu0 %v998
      %v1161 = vpop.f32.mrb[0].mxu0
      %v1162 = vadd.f32 0.0, %v1161
      %v1163 = vpop.f32.mrb[0].mxu0
      %v1164 = vadd.f32 0.0, %v1163
      %1165 = vdwg.mxu0
      %1166 = vrot.lane.b32.xlu0 %v950, 113
      %v1167 = vpop.permute.xlu0 %1166
      %1168 = vrot.lane.b32.xlu0 %v951, 113
      %v1169 = vpop.permute.xlu0 %1168
      %v1170 = vsel %vm408, %v1167, %v1169
      %v1171 = vsel %vm408, %v1169, %v1167
      %v1172 = vmul.f32 %v1170, %v415
      %v1173 = vmul.f32 %v1171, %v419
      %1174 = vrot.lane.b32.xlu0 %v948, 112
      %v1175 = vpop.permute.xlu0 %1174
      %1176 = vrot.lane.b32.xlu0 %v949, 112
      %v1177 = vpop.permute.xlu0 %1176
      %v1178 = vsel %vm428, %v1175, %v1177
      %v1179 = vsel %vm428, %v1177, %v1175
      %v1180 = vmul.f32 %v1178, %v435
      %v1181 = vmul.f32 %v1179, %v439
      %1182 = vrot.lane.b32.xlu0 %v950, 112
      %v1183 = vpop.permute.xlu0 %1182
      %1184 = vrot.lane.b32.xlu0 %v951, 112
      %v1185 = vpop.permute.xlu0 %1184
      %v1186 = vsel %vm428, %v1183, %v1185
      %v1187 = vsel %vm428, %v1185, %v1183
      %v1188 = vmul.f32 %v1186, %v435
      %v1189 = vmul.f32 %v1187, %v439
      %1190 = vmatprep.subr.mxu0 %v987
      %1191 = vmatpush1.msra.mxu0 %v986
      %1192 = vmatprep.subr.mxu0 %v949
      %1193 = vmatpush1.msra.mxu0 %v948
      %1194 = vmatprep.subr.mxu0 %v951
      %1195 = vmatpush1.msra.mxu0 %v950
      %1196 = vmatprep.subr.mxu0 %v995
      %1197 = vmatpush1.msra.mxu0 %v994
      %1198 = vmatprep.subr.mxu0 %v953
      %1199 = vmatpush1.msra.mxu0 %v952
      %1200 = vmatprep.subr.mxu0 %v955
      %1201 = vmatpush1.msra.mxu0 %v954
      %1202 = vmatprep.subr.mxu0 %v1173
      %1203 = vmatpush1.msra.mxu0 %v1172
      %1204 = vmatprep.subr.mxu0 %v1181
      %1205 = vmatpush1.msra.mxu0 %v1180
      %1206 = vmatprep.subr.mxu0 %v1189
      %1207 = vmatpush1.msra.mxu0 %v1188
      %1208 = vmatprep.subr.mxu0 0.0
      %1209 = vmatpush1.msra.mxu0 0.0
      %1210 = vmatprep.subr.mxu0 0.0
      %1211 = vmatpush1.msra.mxu0 0.0
      %1212 = vmatprep.subr.mxu0 0.0
      %1213 = vmatpush1.msra.mxu0 0.0
      %1214 = vmatprep.subr.mxu0 0.0
      %1215 = vmatpush1.msra.mxu0 0.0
      %1216 = vmatprep.subr.mxu0 0.0
      %1217 = vmatpush1.msra.mxu0 0.0
      %1218 = vmatprep.subr.mxu0 0.0
      %1219 = vmatpush1.msra.mxu0 0.0
      %1220 = vmatprep.subr.mxu0 0.0
      %1221 = vmatpush1.msra.mxu0 0.0
      %1222 = vmatprep.subr.mxu0 0.0
      %1223 = vmatpush1.msra.mxu0 0.0
      %1224 = vmatprep.subr.mxu0 0.0
      %1225 = vmatpush1.msra.mxu0 0.0
      %1226 = vmatprep.subr.mxu0 0.0
      %1227 = vmatpush1.msra.mxu0 0.0
      %1228 = vmatprep.subr.mxu0 0.0
      %1229 = vmatpush1.msra.mxu0 0.0
      %1230 = vmatprep.subr.mxu0 0.0
      %1231 = vmatpush1.msra.mxu0 0.0
      %1232 = vmatprep.subr.mxu0 0.0
      %1233 = vmatpush1.msra.mxu0 0.0
      %1234 = vmatprep.subr.mxu0 0.0
      %1235 = vmatpush1.msra.mxu0 0.0
      %1236 = vmatprep.subr.mxu0 0.0
      %1237 = vmatpush1.msra.mxu0 0.0
      %1238 = vmatprep.subr.mxu0 0.0
      %1239 = vmatpush1.msra.mxu0 0.0
      %1240 = vmatprep.subr.mxu0 0.0
      %1241 = vmatpush1.msra.mxu0 0.0
      %1242 = vmatprep.subr.mxu0 0.0
      %1243 = vmatpush1.msra.mxu0 0.0
      %1244 = vmatprep.subr.mxu0 0.0
      %1245 = vmatpush1.msra.mxu0 0.0
      %1246 = vmatprep.subr.mxu0 0.0
      %1247 = vmatpush1.msra.mxu0 0.0
      %1248 = vmatprep.subr.mxu0 0.0
      %1249 = vmatpush1.msra.mxu0 0.0
      %1250 = vmatprep.subr.mxu0 0.0
      %1251 = vmatpush1.msra.mxu0 0.0
      %1252 = vmatprep.subr.mxu0 0.0
      %1253 = vmatpush1.msra.mxu0 0.0
      %1254 = vmatprep.mubr.f32.mxu0 0.0
      %1255 = vmatmul.mubr.f32.gmra.mrb[0].mxu0 %v998
      %v1256 = vpop.f32.mrb[0].mxu0
      %v1257 = vadd.f32 0.0, %v1256
      %v1258 = vpop.f32.mrb[0].mxu0
      %v1259 = vadd.f32 0.0, %v1258
      %1260 = vdwg.mxu0
      %1261 = vrot.lane.b32.xlu0 %v948, 111
      %v1262 = vpop.permute.xlu0 %1261
      %1263 = vrot.lane.b32.xlu0 %v949, 111
      %v1264 = vpop.permute.xlu0 %1263
      %v1265 = vsel %vm456, %v1262, %v1264
      %v1266 = vsel %vm456, %v1264, %v1262
      %v1267 = vmul.f32 %v1265, %v463
      %v1268 = vmul.f32 %v1266, %v467
      %1269 = vmatprep.subr.mxu0 %v949
      %1270 = vmatpush1.msra.mxu0 %v948
      %1271 = vmatprep.subr.mxu0 %v951
      %1272 = vmatpush1.msra.mxu0 %v950
      %1273 = vmatprep.subr.mxu0 %v1086
      %1274 = vmatpush1.msra.mxu0 %v1085
      %1275 = vmatprep.subr.mxu0 %v953
      %1276 = vmatpush1.msra.mxu0 %v952
      %1277 = vmatprep.subr.mxu0 %v955
      %1278 = vmatpush1.msra.mxu0 %v954
      %1279 = vmatprep.subr.mxu0 %v1094
      %1280 = vmatpush1.msra.mxu0 %v1093
      %1281 = vmatprep.subr.mxu0 %v1181
      %1282 = vmatpush1.msra.mxu0 %v1180
      %1283 = vmatprep.subr.mxu0 %v1189
      %1284 = vmatpush1.msra.mxu0 %v1188
      %1285 = vmatprep.subr.mxu0 %v1268
      %1286 = vmatpush1.msra.mxu0 %v1267
      %1287 = vmatprep.subr.mxu0 0.0
      %1288 = vmatpush1.msra.mxu0 0.0
      %1289 = vmatprep.subr.mxu0 0.0
      %1290 = vmatpush1.msra.mxu0 0.0
      %1291 = vmatprep.subr.mxu0 0.0
      %1292 = vmatpush1.msra.mxu0 0.0
      %1293 = vmatprep.subr.mxu0 0.0
      %1294 = vmatpush1.msra.mxu0 0.0
      %1295 = vmatprep.subr.mxu0 0.0
      %1296 = vmatpush1.msra.mxu0 0.0
      %1297 = vmatprep.subr.mxu0 0.0
      %1298 = vmatpush1.msra.mxu0 0.0
      %1299 = vmatprep.subr.mxu0 0.0
      %1300 = vmatpush1.msra.mxu0 0.0
      %1301 = vmatprep.subr.mxu0 0.0
      %1302 = vmatpush1.msra.mxu0 0.0
      %1303 = vmatprep.subr.mxu0 0.0
      %1304 = vmatpush1.msra.mxu0 0.0
      %1305 = vmatprep.subr.mxu0 0.0
      %1306 = vmatpush1.msra.mxu0 0.0
      %1307 = vmatprep.subr.mxu0 0.0
      %1308 = vmatpush1.msra.mxu0 0.0
      %1309 = vmatprep.subr.mxu0 0.0
      %1310 = vmatpush1.msra.mxu0 0.0
      %1311 = vmatprep.subr.mxu0 0.0
      %1312 = vmatpush1.msra.mxu0 0.0
      %1313 = vmatprep.subr.mxu0 0.0
      %1314 = vmatpush1.msra.mxu0 0.0
      %1315 = vmatprep.subr.mxu0 0.0
      %1316 = vmatpush1.msra.mxu0 0.0
      %1317 = vmatprep.subr.mxu0 0.0
      %1318 = vmatpush1.msra.mxu0 0.0
      %1319 = vmatprep.subr.mxu0 0.0
      %1320 = vmatpush1.msra.mxu0 0.0
      %1321 = vmatprep.subr.mxu0 0.0
      %1322 = vmatpush1.msra.mxu0 0.0
      %1323 = vmatprep.subr.mxu0 0.0
      %1324 = vmatpush1.msra.mxu0 0.0
      %1325 = vmatprep.subr.mxu0 0.0
      %1326 = vmatpush1.msra.mxu0 0.0
      %1327 = vmatprep.subr.mxu0 0.0
      %1328 = vmatpush1.msra.mxu0 0.0
      %1329 = vmatprep.subr.mxu0 0.0
      %1330 = vmatpush1.msra.mxu0 0.0
      %1331 = vmatprep.subr.mxu0 0.0
      %1332 = vmatpush1.msra.mxu0 0.0
      %1333 = vmatprep.mubr.f32.mxu0 0.0
      %1334 = vmatmul.mubr.f32.gmra.mrb[0].mxu0 %v998
      %v1335 = vpop.f32.mrb[0].mxu0
      %v1336 = vadd.f32 0.0, %v1335
      %v1337 = vpop.f32.mrb[0].mxu0
      %v1338 = vadd.f32 0.0, %v1337
      %1339 = vdwg.mxu0
      %v1340 = vadd.f32 %v1067, %v1069
      %1341 = vadd.xlane.f32.xlu0 %v1340
      %v1342 = vpop.xlane.xlu0 %1341
      %v1343 = vadd.f32 %v1342, 0.0
      %v1344 = vadd.f32 %v1162, %v1164
      %1345 = vadd.xlane.f32.xlu0 %v1344
      %v1346 = vpop.xlane.xlu0 %1345
      %v1347 = vadd.f32 %v1343, %v1346
      %v1348 = vadd.f32 %v1257, %v1259
      %1349 = vadd.xlane.f32.xlu0 %v1348
      %v1350 = vpop.xlane.xlu0 %1349
      %v1351 = vadd.f32 %v1347, %v1350
      %v1352 = vadd.f32 %v1336, %v1338
      %1353 = vadd.xlane.f32.xlu0 %v1352
      %v1354 = vpop.xlane.xlu0 %1353
      %v1355 = vadd.f32 %v1351, %v1354
      %v1356 = vmul.f32 %v1355, 0.0009765625
      %v1357 = vsub.f32 %v1067, %v1356
      %v1358 = vsub.f32 %v1069, %v1356
      %v1359 = vmul.f32 %v1357, %v1357
      %v1360 = vmul.f32 %v1358, %v1358
      %v1361 = vadd.f32 %v1359, %v1360
      %1362 = vadd.xlane.f32.xlu0 %v1361
      %v1363 = vpop.xlane.xlu0 %1362
      %v1364 = vadd.f32 %v1363, 0.0
      %v1365 = vsub.f32 %v1162, %v1356
      %v1366 = vsub.f32 %v1164, %v1356
      %v1367 = vmul.f32 %v1365, %v1365
      %v1368 = vmul.f32 %v1366, %v1366
      %v1369 = vadd.f32 %v1367, %v1368
      %1370 = vadd.xlane.f32.xlu0 %v1369
      %v1371 = vpop.xlane.xlu0 %1370
      %v1372 = vadd.f32 %v1364, %v1371
      %v1373 = vsub.f32 %v1257, %v1356
      %v1374 = vsub.f32 %v1259, %v1356
      %v1375 = vmul.f32 %v1373, %v1373
      %v1376 = vmul.f32 %v1374, %v1374
      %v1377 = vadd.f32 %v1375, %v1376
      %1378 = vadd.xlane.f32.xlu0 %v1377
      %v1379 = vpop.xlane.xlu0 %1378
      %v1380 = vadd.f32 %v1372, %v1379
      %v1381 = vsub.f32 %v1336, %v1356
      %v1382 = vsub.f32 %v1338, %v1356
      %v1383 = vmul.f32 %v1381, %v1381
      %v1384 = vmul.f32 %v1382, %v1382
      %v1385 = vadd.f32 %v1383, %v1384
      %1386 = vadd.xlane.f32.xlu0 %v1385
      %v1387 = vpop.xlane.xlu0 %1386
      %v1388 = vadd.f32 %v1380, %v1387
      %v1389 = vmul.f32 %v1388, 0.0009765625
      %v1390 = vadd.f32 %v1389, 1e-05
      %v1391 = vrsqrt.pop %v1390
      %v1392 = vmul.f32 %v1357, %v1391
      %v1393 = vmul.f32 %v1358, %v1391
      %v1394 = vmax.f32 %v1392, 0.0
      %v1395 = vmax.f32 %v1393, 0.0
      %1396 = vst [vmem:[%s251] sm:$0xff] %v1394
      %1397 = vst [vmem:[%s251 + $0x8] sm:$0xff] %v1395
      %v1398 = vmul.f32 %v1365, %v1391
      %v1399 = vmul.f32 %v1366, %v1391
      %v1400 = vmax.f32 %v1398, 0.0
      %v1401 = vmax.f32 %v1399, 0.0
      %1402 = vst [vmem:[%s251 + $0x10] sm:$0xff] %v1400
      %1403 = vst [vmem:[%s251 + $0x18] sm:$0xff] %v1401
      %v1404 = vmul.f32 %v1373, %v1391
      %v1405 = vmul.f32 %v1374, %v1391
      %v1406 = vmax.f32 %v1404, 0.0
      %v1407 = vmax.f32 %v1405, 0.0
      %1408 = vst [vmem:[%s251 + $0x20] sm:$0xff] %v1406
      %1409 = vst [vmem:[%s251 + $0x28] sm:$0xff] %v1407
      %v1410 = vmul.f32 %v1381, %v1391
      %v1411 = vmul.f32 %v1382, %v1391
      %v1412 = vmax.f32 %v1410, 0.0
      %v1413 = vmax.f32 %v1411, 0.0
      %1414 = vst [vmem:[%s251 + $0x30] sm:$0xff] %v1412
      %1415 = vst [vmem:[%s251 + $0x38] sm:$0xff] %v1413
      %p1416 = scmp.lt.s32.totalorder %s17, 1
      %s1417 = scalar_select %p1416, %s17, 1
      %s1418 = smul.addr %s1417, 8
      %s1419 = smul.addr %s1418, 8
      %s1420 = scalar_lea.vmem %s6, %s1419
      // Predicated region
      $region45: #{_mixffm_tensor.1} parent=43 // pred_check
        %p1421 = pneg %p166
      $region46: #{_mixffm_tensor.1} parent=43 // pred_check_branch
        %1423 = sbr.rel (%p1421) target = $region48
      $region47: #{_mixffm_tensor.1} parent=43 // pred_region
        _
      $region48: #{_mixffm_tensor.1} parent=43 // pred_fallthru
        _
    $region44: #{_mixffm_tensor.1} parent=5 // pred_fallthru
      _
    %p1424 = scmp.le.s32.totalorder 2, %s12
    // Predicated region
    $region49: #{_mixffm_tensor.1} parent=5 // pred_check
      %p1425 = pneg %p1424
    $region50: #{_mixffm_tensor.1} parent=5 // pred_check_branch
      %1427 = sbr.rel (%p1425) target = $region52
    $region51: #{_mixffm_tensor.1} parent=5 // pred_region
      %s1428 = ssub.s32 %s12, 2
      // Predicated region
      $region53: #{_mixffm_tensor.1} parent=51 // pred_check
        %p1429 = pneg %p172
      $region54: #{_mixffm_tensor.1} parent=51 // pred_check_branch
        %1431 = sbr.rel (%p1429) target = $region56
      $region55: #{_mixffm_tensor.1} parent=51 // pred_region
        %p1432 = scmp.lt.s32.totalorder %s18, 1
        %s1433 = scalar_select %p1432, %s18, 1
        %s1434 = smul.addr %s1433, 8
        %s1435 = smul.addr %s1434, 8
        %s1436 = scalar_lea.vmem %s6, %s1435
      $region56: #{_mixffm_tensor.1} parent=51 // pred_fallthru
        _
    $region52: #{_mixffm_tensor.1} parent=5 // pred_fallthru
      _
  $region6: #{_mixffm_tensor.1} parent=0 // loop_footer
    %s16 = sadd.s32 1, %s12
  $region7: #{_mixffm_tensor.1} parent=0 // loop_footer_branch
    %11 = sbr.rel target = $region3
  $region8: #{_mixffm_tensor.1} parent=0 // loop_exit
    _

</llo_original>
